<compile_context>
chip_gen: v7x
topology: tpu7x:2x2x1
jax: 0.10.0
libtpu: 0.0.40
codegen_flags: <defaults>
</compile_context>

<pallas_src>
import math

import jax
import jax.numpy as jnp
from jax.experimental import pallas as pl
from jax.experimental.pallas import tpu as pltpu

# ---- small, deterministic config (stands in for `config` / bert.config) ----
B = 2               # batch
L = 8               # max sequence length
H = 32              # bert hidden_size == config.embedding_size
NUM_GCN_LAYERS = 2  # config.num_gcn_layers
DEP_TYPE_NUM = 6    # config.dep_type_num
NUM_LABELS = 4      # config.num_labels
OUT_PAD = 128       # lane-dense output slab width (pooled | logits | zeros)

_SCALE = 1.0 / math.sqrt(H)


# --------------------------------------------------------------------------
# Single fused kernel: embedding gather + get_attention + GCN stack + head.
# --------------------------------------------------------------------------
def _contrast_bert_kernel(seq_ref, cls_ref, dt_ref, dtT_ref, table_ref,
                          w_ref, b_ref, w1_ref, b1_ref, w2_ref, b2_ref,
                          out_ref):
    words = seq_ref[...]                      # [B, L, H] f32 (words_output)
    dt = dt_ref[...]                          # [B, L, L] int32 dep_type
    dtT = dtT_ref[...]                        # [B, L, L] int32 dep_type^T
    table = table_ref[...]                    # [T, H]    dep-type embedding table

    # ---- in-kernel embedding gather via one-hot matmul on the MXU ----------
    t_iota = jax.lax.broadcasted_iota(jnp.int32, (B, L, L, DEP_TYPE_NUM), 3)
    oh = (dt[:, :, :, None] == t_iota).astype(jnp.float32)      # [B,L,L,T]
    ohT = (dtT[:, :, :, None] == t_iota).astype(jnp.float32)    # [B,L,L,T]
    dep = jnp.dot(oh.reshape(B * L * L, DEP_TYPE_NUM), table,
                  preferred_element_type=jnp.float32).reshape(B, L, L, H)
    depT = jnp.dot(ohT.reshape(B * L * L, DEP_TYPE_NUM), table,
                   preferred_element_type=jnp.float32).reshape(B, L, L, H)

    # ---- layer-invariant attention pieces (hoisted out of the layer loop) --
    adj_mask = dt > 0                                            # clamp(dt,0,1)
    dep_term_s = jnp.sum(dep * depT, axis=-1) * _SCALE           # [B,L,L]

    for layer in range(NUM_GCN_LAYERS):
        W = w_ref[layer].astype(jnp.bfloat16)                    # [H, H]
        bias = b_ref[layer:layer + 1, :]                         # [1, H]

        # -- get_attention:  score[b,i,j] = (w_i.w_j + dep_ij.dep_ji)/sqrt(H)
        words_bf = words.astype(jnp.bfloat16)
        qk = jnp.einsum("bih,bjh->bij", words_bf, words_bf,
                        preferred_element_type=jnp.float32)      # [B,L,L]
        score = qk * _SCALE + dep_term_s
        # stabilized exp: subtract masked row max (math-equivalent up to 1e-10 eps)
        m = jnp.max(jnp.where(adj_mask, score, -1e30), axis=-1, keepdims=True)
        m = jnp.where(m < -1e29, 0.0, m)
        e = jnp.where(adj_mask, jnp.exp(score - m), 0.0)
        attn = e / (jnp.sum(e, axis=-1, keepdims=True) + 1e-10)  # [B,L,L]

        # -- GraphConvolution: relu( sum_j attn[i,j]*((w_j + dep_ji) @ W) + b )
        #    == relu( (attn @ words + weighted_dep) @ W + b )  -> one MXU @W.
        attn_bf = attn.astype(jnp.bfloat16)
        aw = jnp.einsum("bij,bjh->bih", attn_bf, words_bf,
                        preferred_element_type=jnp.float32)      # [B,L,H]
        # small (L=8): VPU broadcast + sublane reduce; at larger L make this a
        # batched dot_general on the MXU.
        wdep = jnp.sum(attn[:, :, :, None] * depT, axis=2)       # [B,L,H]
        msg = (aw + wdep).astype(jnp.bfloat16).reshape(B * L, H)
        words = jnp.maximum(
            jnp.dot(msg, W, preferred_element_type=jnp.float32) + bias,
            0.0).reshape(B, L, H)

    # ---- fused head: mean over seq, fc_layer (split-concat), fc ------------
    # TODO(synk): matches the reference (unmasked mean over all L positions).
    text_cls = cls_ref[...].astype(jnp.bfloat16)                 # [B, H]
    words_mean = (jnp.sum(words, axis=1) * (1.0 / L)).astype(jnp.bfloat16)
    w1_cls = w1_ref[0:H, :].astype(jnp.bfloat16)                 # [H, H]
    w1_gcn = w1_ref[H:2 * H, :].astype(jnp.bfloat16)             # [H, H]
    pooled = (jnp.dot(text_cls, w1_cls, preferred_element_type=jnp.float32)
              + jnp.dot(words_mean, w1_gcn, preferred_element_type=jnp.float32)
              + b1_ref[...])                                     # [B, H]
    logits = (jnp.dot(pooled.astype(jnp.bfloat16),
                      w2_ref[...].astype(jnp.bfloat16),
                      preferred_element_type=jnp.float32)
              + b2_ref[...])                                     # [B, C]

    # lane-dense padded output slab: [ pooled | logits | zeros ]
    out_ref[...] = jnp.zeros((B, OUT_PAD), jnp.float32)
    out_ref[:, 0:H] = pooled
    out_ref[:, H:H + NUM_LABELS] = logits


# --------------------------------------------------------------------------
# Wrapper
# --------------------------------------------------------------------------
def _forward_impl(sequence_output, dep_type_matrix, params):
    dep_type_matrix = dep_type_matrix.astype(jnp.int32)
    dtT = jnp.swapaxes(dep_type_matrix, 1, 2)      # tiny int transpose in XLA
    text_cls = sequence_output[:, 0, :]            # [B, H]

    vm = pltpu.MemorySpace.VMEM
    out = pl.pallas_call(
        _contrast_bert_kernel,
        out_shape=jax.ShapeDtypeStruct((B, OUT_PAD), jnp.float32),
        in_specs=[pl.BlockSpec(memory_space=vm)] * 11,
        out_specs=pl.BlockSpec(memory_space=vm),
    )(sequence_output, text_cls, dep_type_matrix, dtT,
      params["dep_emb_table"], params["gcn_w"], params["gcn_b"],
      params["w_fc_layer"], params["b_fc_layer"],
      params["w_fc"], params["b_fc"])

    pooled = out[:, :H]
    logits = out[:, H:H + NUM_LABELS]
    loss = 0.0  # labels=None path
    return logits, loss, pooled


contrast_bert_forward = jax.jit(_forward_impl)


# --------------------------------------------------------------------------
# Pure-JAX reference (same semantics as the PyTorch module, f32 throughout).
# --------------------------------------------------------------------------
def reference_forward(sequence_output, dep_type_matrix, params):
    table = params["dep_emb_table"]
    dep = jnp.take(table, dep_type_matrix, axis=0)          # [B,L,L,H]
    depT = jnp.swapaxes(dep, 1, 2)
    adj = jnp.clip(dep_type_matrix, 0, 1).astype(jnp.float32)
    words = sequence_output
    for layer in range(NUM_GCN_LAYERS):
        W = params["gcn_w"][layer]
        b = params["gcn_b"][layer]
        qk = jnp.einsum("bih,bjh->bij", words, words)
        dep_term = jnp.sum(dep * depT, axis=-1)
        score = (qk + dep_term) * _SCALE
        e = jnp.exp(score) * adj
        attn = e / (jnp.sum(e, axis=-1, keepdims=True) + 1e-10)
        msg = (jnp.einsum("bij,bjh->bih", attn, words)
               + jnp.einsum("bij,bijh->bih", attn, depT))
        words = jnp.maximum(msg @ W + b[None, None, :], 0.0)
    text_cls = sequence_output[:, 0, :]
    words_mean = jnp.mean(words, axis=1)
    pooled = (jnp.concatenate([text_cls, words_mean], axis=-1)
              @ params["w_fc_layer"] + params["b_fc_layer"])
    logits = pooled @ params["w_fc"] + params["b_fc"]
    return logits, pooled


def init_params(key):
    ks = jax.random.split(key, 7)
    emb = jax.random.normal(ks[0], (DEP_TYPE_NUM, H), jnp.float32) * 0.02
    emb = emb.at[0].set(0.0)  # nn.Embedding(padding_idx=0)
    return {
        "dep_emb_table": emb,
        "gcn_w": jax.random.normal(ks[1], (NUM_GCN_LAYERS, H, H), jnp.float32) * 0.1,
        "gcn_b": jax.random.normal(ks[2], (NUM_GCN_LAYERS, H), jnp.float32) * 0.01,
        # Linear weights stored [in, out] (transpose of torch's [out, in]) for x @ W.
        "w_fc_layer": jax.random.normal(ks[3], (2 * H, H), jnp.float32) * 0.05,
        "b_fc_layer": jax.random.normal(ks[4], (1, H), jnp.float32) * 0.01,
        "w_fc": jax.random.normal(ks[5], (H, NUM_LABELS), jnp.float32) * 0.05,
        "b_fc": jax.random.normal(ks[6], (1, NUM_LABELS), jnp.float32) * 0.01,
    }


if __name__ == "__main__":
    key = jax.random.PRNGKey(0)
    kp, kx, kd = jax.random.split(key, 3)
    params = init_params(kp)

    # Stand-in for bert(**inputs).last_hidden_state
    sequence_output = jax.random.normal(kx, (B, L, H), jnp.float32)
    # Dependency-type matrix (0 = no arc / padding); diagonal self-loops so every
    # row has at least one nonzero adjacency entry.
    dep_type_matrix = jax.random.randint(kd, (B, L, L), 0, DEP_TYPE_NUM).astype(jnp.int32)
    dep_type_matrix = jnp.where(jnp.eye(L, dtype=jnp.int32)[None] > 0, 1, dep_type_matrix)

    logits, loss, pooled = contrast_bert_forward(sequence_output, dep_type_matrix, params)
    jax.block_until_ready((logits, pooled))

    assert logits.shape == (B, NUM_LABELS)
    assert pooled.shape == (B, H)

    # Correctness vs f32 reference (kernel uses bf16 MXU operands -> loose tol).
    ref_logits, ref_pooled = reference_forward(sequence_output, dep_type_matrix, params)

    def _close(a, b, atol=3e-2, rtol=5e-2):
        return bool(jnp.all(jnp.abs(a - b) <= atol + rtol * jnp.abs(b)))

    assert _close(pooled, ref_pooled), "pooled_output mismatch vs reference"
    assert _close(logits, ref_logits), "logits mismatch vs reference"

    print("KERNEL_OK")
</pallas_src>

<mosaic_0001>
module attributes {stable_mosaic.version = 11 : i64} {
  func.func @_contrast_bert_kernel(%arg0: memref<2x8x32xf32, #tpu.memory_space<vmem>>, %arg1: memref<2x32xf32, #tpu.memory_space<vmem>>, %arg2: memref<2x8x8xi32, #tpu.memory_space<vmem>>, %arg3: memref<2x8x8xi32, #tpu.memory_space<vmem>>, %arg4: memref<6x32xf32, #tpu.memory_space<vmem>>, %arg5: memref<2x32x32xf32, #tpu.memory_space<vmem>>, %arg6: memref<2x32xf32, #tpu.memory_space<vmem>>, %arg7: memref<64x32xf32, #tpu.memory_space<vmem>>, %arg8: memref<1x32xf32, #tpu.memory_space<vmem>>, %arg9: memref<32x4xf32, #tpu.memory_space<vmem>>, %arg10: memref<1x4xf32, #tpu.memory_space<vmem>>, %arg11: memref<2x128xf32, #tpu.memory_space<vmem>>) attributes {dimension_semantics = [], scalar_prefetch = 0 : i64, scratch_operands = 0 : i64, tpu.core_type = #tpu.core_type<tc>} {
    %c0 = arith.constant 0 : index
    %c0_0 = arith.constant 0 : index
    %c0_1 = arith.constant 0 : index
    %0 = vector.load %arg0[%c0, %c0_0, %c0_1] : memref<2x8x32xf32, #tpu.memory_space<vmem>>, vector<2x8x32xf32>
    %c0_2 = arith.constant 0 : index
    %c0_3 = arith.constant 0 : index
    %c0_4 = arith.constant 0 : index
    %1 = vector.load %arg2[%c0_2, %c0_3, %c0_4] : memref<2x8x8xi32, #tpu.memory_space<vmem>>, vector<2x8x8xi32>
    %c0_5 = arith.constant 0 : index
    %c0_6 = arith.constant 0 : index
    %c0_7 = arith.constant 0 : index
    %2 = vector.load %arg3[%c0_5, %c0_6, %c0_7] : memref<2x8x8xi32, #tpu.memory_space<vmem>>, vector<2x8x8xi32>
    %c0_8 = arith.constant 0 : index
    %c0_9 = arith.constant 0 : index
    %3 = vector.load %arg4[%c0_8, %c0_9] : memref<6x32xf32, #tpu.memory_space<vmem>>, vector<6x32xf32>
    %4 = tpu.iota {dimensions = array<i32: 3>} : vector<2x8x8x6xi32>
    %5 = vector.shape_cast %1 : vector<2x8x8xi32> to vector<2x8x8x1xi32>
    %6 = vector.broadcast %5 : vector<2x8x8x1xi32> to vector<2x8x8x6xi32>
    %7 = arith.cmpi eq, %6, %4 : vector<2x8x8x6xi32>
    %8 = arith.extui %7 : vector<2x8x8x6xi1> to vector<2x8x8x6xi32>
    %9 = arith.sitofp %8 : vector<2x8x8x6xi32> to vector<2x8x8x6xf32>
    %10 = vector.shape_cast %2 : vector<2x8x8xi32> to vector<2x8x8x1xi32>
    %11 = vector.broadcast %10 : vector<2x8x8x1xi32> to vector<2x8x8x6xi32>
    %12 = arith.cmpi eq, %11, %4 : vector<2x8x8x6xi32>
    %13 = arith.extui %12 : vector<2x8x8x6xi1> to vector<2x8x8x6xi32>
    %14 = arith.sitofp %13 : vector<2x8x8x6xi32> to vector<2x8x8x6xf32>
    %15 = vector.shape_cast %9 : vector<2x8x8x6xf32> to vector<128x6xf32>
    %cst = arith.constant dense<0.000000e+00> : vector<128x32xf32>
    %16 = tpu.matmul %15, %3, %cst {dimension_numbers = #tpu.dot_dimension_numbers<[1], [0], [0], [1], [0, 0, 1, 1], [], []>} : vector<128x6xf32>, vector<6x32xf32>, vector<128x32xf32> -> vector<128x32xf32>
    %17 = vector.shape_cast %16 : vector<128x32xf32> to vector<2x8x8x32xf32>
    %18 = vector.shape_cast %14 : vector<2x8x8x6xf32> to vector<128x6xf32>
    %cst_10 = arith.constant dense<0.000000e+00> : vector<128x32xf32>
    %19 = tpu.matmul %18, %3, %cst_10 {dimension_numbers = #tpu.dot_dimension_numbers<[1], [0], [0], [1], [0, 0, 1, 1], [], []>} : vector<128x6xf32>, vector<6x32xf32>, vector<128x32xf32> -> vector<128x32xf32>
    %20 = vector.shape_cast %19 : vector<128x32xf32> to vector<2x8x8x32xf32>
    %c0_i32 = arith.constant 0 : i32
    %21 = vector.broadcast %c0_i32 : i32 to vector<2x8x8xi32>
    %22 = arith.cmpi sgt, %1, %21 : vector<2x8x8xi32>
    %23 = arith.mulf %17, %20 : vector<2x8x8x32xf32>
    %cst_11 = arith.constant dense<0.000000e+00> : vector<2x8x8xf32>
    %24 = vector.multi_reduction <add>, %23, %cst_11 [3] : vector<2x8x8x32xf32> to vector<2x8x8xf32>
    %cst_12 = arith.constant 0.176776692 : f32
    %25 = vector.broadcast %cst_12 : f32 to vector<2x8x8xf32>
    %26 = arith.mulf %24, %25 : vector<2x8x8xf32>
    %c0_13 = arith.constant 0 : index
    %c0_14 = arith.constant 0 : index
    %c0_15 = arith.constant 0 : index
    %27 = vector.load %arg5[%c0_13, %c0_14, %c0_15] : memref<2x32x32xf32, #tpu.memory_space<vmem>>, vector<1x32x32xf32>
    %28 = vector.shape_cast %27 : vector<1x32x32xf32> to vector<32x32xf32>
    %29 = arith.truncf %28 : vector<32x32xf32> to vector<32x32xbf16>
    %c0_16 = arith.constant 0 : index
    %c0_17 = arith.constant 0 : index
    %30 = vector.load %arg6[%c0_16, %c0_17] : memref<2x32xf32, #tpu.memory_space<vmem>>, vector<1x32xf32>
    %31 = arith.truncf %0 : vector<2x8x32xf32> to vector<2x8x32xbf16>
    "tpu.trace_start"() <{level = 10 : i32, message = "bih,bjh->bij"}> : () -> ()
    %cst_18 = arith.constant dense<0.000000e+00> : vector<2x8x8xf32>
    %32 = tpu.matmul %31, %31, %cst_18 {dimension_numbers = #tpu.dot_dimension_numbers<[2], [2], [1], [1], [0, 0, 0, 1, 1, 1], [0], [0]>} : vector<2x8x32xbf16>, vector<2x8x32xbf16>, vector<2x8x8xf32> -> vector<2x8x8xf32>
    "tpu.trace_stop"() : () -> ()
    %cst_19 = arith.constant 0.176776692 : f32
    %33 = vector.broadcast %cst_19 : f32 to vector<2x8x8xf32>
    %34 = arith.mulf %32, %33 : vector<2x8x8xf32>
    %35 = arith.addf %34, %26 : vector<2x8x8xf32>
    %cst_20 = arith.constant -1.000000e+30 : f32
    %36 = vector.broadcast %cst_20 : f32 to vector<2x8x8xf32>
    %37 = arith.select %22, %35, %36 : vector<2x8x8xi1>, vector<2x8x8xf32>
    %cst_21 = arith.constant dense<0xFF800000> : vector<2x8xf32>
    %38 = vector.multi_reduction <maximumf>, %37, %cst_21 [2] : vector<2x8x8xf32> to vector<2x8xf32>
    %39 = vector.shape_cast %38 : vector<2x8xf32> to vector<2x8x1xf32>
    %cst_22 = arith.constant -1.000000e+29 : f32
    %40 = vector.broadcast %cst_22 : f32 to vector<2x8x1xf32>
    %41 = arith.cmpf olt, %39, %40 : vector<2x8x1xf32>
    %cst_23 = arith.constant 0.000000e+00 : f32
    %42 = vector.broadcast %cst_23 : f32 to vector<2x8x1xf32>
    %43 = arith.select %41, %42, %39 : vector<2x8x1xi1>, vector<2x8x1xf32>
    %44 = vector.broadcast %43 : vector<2x8x1xf32> to vector<2x8x8xf32>
    %45 = arith.subf %35, %44 : vector<2x8x8xf32>
    %46 = math.exp %45 : vector<2x8x8xf32>
    %cst_24 = arith.constant 0.000000e+00 : f32
    %47 = vector.broadcast %cst_24 : f32 to vector<2x8x8xf32>
    %48 = arith.select %22, %46, %47 : vector<2x8x8xi1>, vector<2x8x8xf32>
    %cst_25 = arith.constant dense<0.000000e+00> : vector<2x8xf32>
    %49 = vector.multi_reduction <add>, %48, %cst_25 [2] : vector<2x8x8xf32> to vector<2x8xf32>
    %50 = vector.shape_cast %49 : vector<2x8xf32> to vector<2x8x1xf32>
    %cst_26 = arith.constant 1.000000e-10 : f32
    %51 = vector.broadcast %cst_26 : f32 to vector<2x8x1xf32>
    %52 = arith.addf %50, %51 : vector<2x8x1xf32>
    %53 = vector.broadcast %52 : vector<2x8x1xf32> to vector<2x8x8xf32>
    %54 = arith.divf %48, %53 : vector<2x8x8xf32>
    %55 = arith.truncf %54 : vector<2x8x8xf32> to vector<2x8x8xbf16>
    "tpu.trace_start"() <{level = 10 : i32, message = "bij,bjh->bih"}> : () -> ()
    %cst_27 = arith.constant dense<0.000000e+00> : vector<2x8x32xf32>
    %56 = tpu.matmul %55, %31, %cst_27 {dimension_numbers = #tpu.dot_dimension_numbers<[2], [1], [1], [2], [0, 0, 0, 1, 1, 2], [0], [0]>} : vector<2x8x8xbf16>, vector<2x8x32xbf16>, vector<2x8x32xf32> -> vector<2x8x32xf32>
    "tpu.trace_stop"() : () -> ()
    %57 = vector.shape_cast %54 : vector<2x8x8xf32> to vector<2x8x8x1xf32>
    %58 = vector.broadcast %57 : vector<2x8x8x1xf32> to vector<2x8x8x32xf32>
    %59 = arith.mulf %58, %20 : vector<2x8x8x32xf32>
    %cst_28 = arith.constant dense<0.000000e+00> : vector<2x8x32xf32>
    %60 = vector.multi_reduction <add>, %59, %cst_28 [2] : vector<2x8x8x32xf32> to vector<2x8x32xf32>
    %61 = arith.addf %56, %60 : vector<2x8x32xf32>
    %62 = arith.truncf %61 : vector<2x8x32xf32> to vector<2x8x32xbf16>
    %63 = vector.shape_cast %62 : vector<2x8x32xbf16> to vector<16x32xbf16>
    %cst_29 = arith.constant dense<0.000000e+00> : vector<16x32xf32>
    %64 = tpu.matmul %63, %29, %cst_29 {dimension_numbers = #tpu.dot_dimension_numbers<[1], [0], [0], [1], [0, 0, 1, 1], [], []>} : vector<16x32xbf16>, vector<32x32xbf16>, vector<16x32xf32> -> vector<16x32xf32>
    %65 = vector.broadcast %30 : vector<1x32xf32> to vector<16x32xf32>
    %66 = arith.addf %64, %65 : vector<16x32xf32>
    %cst_30 = arith.constant 0.000000e+00 : f32
    %67 = vector.broadcast %cst_30 : f32 to vector<16x32xf32>
    %68 = arith.maximumf %66, %67 : vector<16x32xf32>
    %69 = vector.shape_cast %68 : vector<16x32xf32> to vector<2x8x32xf32>
    %c1 = arith.constant 1 : index
    %c0_31 = arith.constant 0 : index
    %c0_32 = arith.constant 0 : index
    %70 = vector.load %arg5[%c1, %c0_31, %c0_32] : memref<2x32x32xf32, #tpu.memory_space<vmem>>, vector<1x32x32xf32>
    %71 = vector.shape_cast %70 : vector<1x32x32xf32> to vector<32x32xf32>
    %72 = arith.truncf %71 : vector<32x32xf32> to vector<32x32xbf16>
    %c1_33 = arith.constant 1 : index
    %c0_34 = arith.constant 0 : index
    %73 = vector.load %arg6[%c1_33, %c0_34] : memref<2x32xf32, #tpu.memory_space<vmem>>, vector<1x32xf32>
    %74 = arith.truncf %69 : vector<2x8x32xf32> to vector<2x8x32xbf16>
    "tpu.trace_start"() <{level = 10 : i32, message = "bih,bjh->bij"}> : () -> ()
    %cst_35 = arith.constant dense<0.000000e+00> : vector<2x8x8xf32>
    %75 = tpu.matmul %74, %74, %cst_35 {dimension_numbers = #tpu.dot_dimension_numbers<[2], [2], [1], [1], [0, 0, 0, 1, 1, 1], [0], [0]>} : vector<2x8x32xbf16>, vector<2x8x32xbf16>, vector<2x8x8xf32> -> vector<2x8x8xf32>
    "tpu.trace_stop"() : () -> ()
    %cst_36 = arith.constant 0.176776692 : f32
    %76 = vector.broadcast %cst_36 : f32 to vector<2x8x8xf32>
    %77 = arith.mulf %75, %76 : vector<2x8x8xf32>
    %78 = arith.addf %77, %26 : vector<2x8x8xf32>
    %cst_37 = arith.constant -1.000000e+30 : f32
    %79 = vector.broadcast %cst_37 : f32 to vector<2x8x8xf32>
    %80 = arith.select %22, %78, %79 : vector<2x8x8xi1>, vector<2x8x8xf32>
    %cst_38 = arith.constant dense<0xFF800000> : vector<2x8xf32>
    %81 = vector.multi_reduction <maximumf>, %80, %cst_38 [2] : vector<2x8x8xf32> to vector<2x8xf32>
    %82 = vector.shape_cast %81 : vector<2x8xf32> to vector<2x8x1xf32>
    %cst_39 = arith.constant -1.000000e+29 : f32
    %83 = vector.broadcast %cst_39 : f32 to vector<2x8x1xf32>
    %84 = arith.cmpf olt, %82, %83 : vector<2x8x1xf32>
    %cst_40 = arith.constant 0.000000e+00 : f32
    %85 = vector.broadcast %cst_40 : f32 to vector<2x8x1xf32>
    %86 = arith.select %84, %85, %82 : vector<2x8x1xi1>, vector<2x8x1xf32>
    %87 = vector.broadcast %86 : vector<2x8x1xf32> to vector<2x8x8xf32>
    %88 = arith.subf %78, %87 : vector<2x8x8xf32>
    %89 = math.exp %88 : vector<2x8x8xf32>
    %cst_41 = arith.constant 0.000000e+00 : f32
    %90 = vector.broadcast %cst_41 : f32 to vector<2x8x8xf32>
    %91 = arith.select %22, %89, %90 : vector<2x8x8xi1>, vector<2x8x8xf32>
    %cst_42 = arith.constant dense<0.000000e+00> : vector<2x8xf32>
    %92 = vector.multi_reduction <add>, %91, %cst_42 [2] : vector<2x8x8xf32> to vector<2x8xf32>
    %93 = vector.shape_cast %92 : vector<2x8xf32> to vector<2x8x1xf32>
    %cst_43 = arith.constant 1.000000e-10 : f32
    %94 = vector.broadcast %cst_43 : f32 to vector<2x8x1xf32>
    %95 = arith.addf %93, %94 : vector<2x8x1xf32>
    %96 = vector.broadcast %95 : vector<2x8x1xf32> to vector<2x8x8xf32>
    %97 = arith.divf %91, %96 : vector<2x8x8xf32>
    %98 = arith.truncf %97 : vector<2x8x8xf32> to vector<2x8x8xbf16>
    "tpu.trace_start"() <{level = 10 : i32, message = "bij,bjh->bih"}> : () -> ()
    %cst_44 = arith.constant dense<0.000000e+00> : vector<2x8x32xf32>
    %99 = tpu.matmul %98, %74, %cst_44 {dimension_numbers = #tpu.dot_dimension_numbers<[2], [1], [1], [2], [0, 0, 0, 1, 1, 2], [0], [0]>} : vector<2x8x8xbf16>, vector<2x8x32xbf16>, vector<2x8x32xf32> -> vector<2x8x32xf32>
    "tpu.trace_stop"() : () -> ()
    %100 = vector.shape_cast %97 : vector<2x8x8xf32> to vector<2x8x8x1xf32>
    %101 = vector.broadcast %100 : vector<2x8x8x1xf32> to vector<2x8x8x32xf32>
    %102 = arith.mulf %101, %20 : vector<2x8x8x32xf32>
    %cst_45 = arith.constant dense<0.000000e+00> : vector<2x8x32xf32>
    %103 = vector.multi_reduction <add>, %102, %cst_45 [2] : vector<2x8x8x32xf32> to vector<2x8x32xf32>
    %104 = arith.addf %99, %103 : vector<2x8x32xf32>
    %105 = arith.truncf %104 : vector<2x8x32xf32> to vector<2x8x32xbf16>
    %106 = vector.shape_cast %105 : vector<2x8x32xbf16> to vector<16x32xbf16>
    %cst_46 = arith.constant dense<0.000000e+00> : vector<16x32xf32>
    %107 = tpu.matmul %106, %72, %cst_46 {dimension_numbers = #tpu.dot_dimension_numbers<[1], [0], [0], [1], [0, 0, 1, 1], [], []>} : vector<16x32xbf16>, vector<32x32xbf16>, vector<16x32xf32> -> vector<16x32xf32>
    %108 = vector.broadcast %73 : vector<1x32xf32> to vector<16x32xf32>
    %109 = arith.addf %107, %108 : vector<16x32xf32>
    %cst_47 = arith.constant 0.000000e+00 : f32
    %110 = vector.broadcast %cst_47 : f32 to vector<16x32xf32>
    %111 = arith.maximumf %109, %110 : vector<16x32xf32>
    %112 = vector.shape_cast %111 : vector<16x32xf32> to vector<2x8x32xf32>
    %c0_48 = arith.constant 0 : index
    %c0_49 = arith.constant 0 : index
    %113 = vector.load %arg1[%c0_48, %c0_49] : memref<2x32xf32, #tpu.memory_space<vmem>>, vector<2x32xf32>
    %114 = arith.truncf %113 : vector<2x32xf32> to vector<2x32xbf16>
    %cst_50 = arith.constant dense<0.000000e+00> : vector<2x32xf32>
    %115 = vector.multi_reduction <add>, %112, %cst_50 [1] : vector<2x8x32xf32> to vector<2x32xf32>
    %cst_51 = arith.constant 1.250000e-01 : f32
    %116 = vector.broadcast %cst_51 : f32 to vector<2x32xf32>
    %117 = arith.mulf %115, %116 : vector<2x32xf32>
    %118 = arith.truncf %117 : vector<2x32xf32> to vector<2x32xbf16>
    %c0_52 = arith.constant 0 : index
    %c0_53 = arith.constant 0 : index
    %119 = vector.load %arg7[%c0_52, %c0_53] : memref<64x32xf32, #tpu.memory_space<vmem>>, vector<32x32xf32>
    %120 = arith.truncf %119 : vector<32x32xf32> to vector<32x32xbf16>
    %c32 = arith.constant 32 : index
    %c0_54 = arith.constant 0 : index
    %121 = vector.load %arg7[%c32, %c0_54] : memref<64x32xf32, #tpu.memory_space<vmem>>, vector<32x32xf32>
    %122 = arith.truncf %121 : vector<32x32xf32> to vector<32x32xbf16>
    %cst_55 = arith.constant dense<0.000000e+00> : vector<2x32xf32>
    %123 = tpu.matmul %114, %120, %cst_55 {dimension_numbers = #tpu.dot_dimension_numbers<[1], [0], [0], [1], [0, 0, 1, 1], [], []>} : vector<2x32xbf16>, vector<32x32xbf16>, vector<2x32xf32> -> vector<2x32xf32>
    %cst_56 = arith.constant dense<0.000000e+00> : vector<2x32xf32>
    %124 = tpu.matmul %118, %122, %cst_56 {dimension_numbers = #tpu.dot_dimension_numbers<[1], [0], [0], [1], [0, 0, 1, 1], [], []>} : vector<2x32xbf16>, vector<32x32xbf16>, vector<2x32xf32> -> vector<2x32xf32>
    %125 = arith.addf %123, %124 : vector<2x32xf32>
    %c0_57 = arith.constant 0 : index
    %c0_58 = arith.constant 0 : index
    %126 = vector.load %arg8[%c0_57, %c0_58] : memref<1x32xf32, #tpu.memory_space<vmem>>, vector<1x32xf32>
    %127 = vector.broadcast %126 : vector<1x32xf32> to vector<2x32xf32>
    %128 = arith.addf %125, %127 : vector<2x32xf32>
    %129 = arith.truncf %128 : vector<2x32xf32> to vector<2x32xbf16>
    %c0_59 = arith.constant 0 : index
    %c0_60 = arith.constant 0 : index
    %130 = vector.load %arg9[%c0_59, %c0_60] : memref<32x4xf32, #tpu.memory_space<vmem>>, vector<32x4xf32>
    %131 = arith.truncf %130 : vector<32x4xf32> to vector<32x4xbf16>
    %cst_61 = arith.constant dense<0.000000e+00> : vector<2x4xf32>
    %132 = tpu.matmul %129, %131, %cst_61 {dimension_numbers = #tpu.dot_dimension_numbers<[1], [0], [0], [1], [0, 0, 1, 1], [], []>} : vector<2x32xbf16>, vector<32x4xbf16>, vector<2x4xf32> -> vector<2x4xf32>
    %c0_62 = arith.constant 0 : index
    %c0_63 = arith.constant 0 : index
    %133 = vector.load %arg10[%c0_62, %c0_63] : memref<1x4xf32, #tpu.memory_space<vmem>>, vector<1x4xf32>
    %134 = vector.broadcast %133 : vector<1x4xf32> to vector<2x4xf32>
    %135 = arith.addf %132, %134 : vector<2x4xf32>
    %cst_64 = arith.constant 0.000000e+00 : f32
    %136 = vector.broadcast %cst_64 : f32 to vector<2x128xf32>
    %c0_65 = arith.constant 0 : index
    %c0_66 = arith.constant 0 : index
    %137 = vector.load %arg11[%c0_65, %c0_66] : memref<2x128xf32, #tpu.memory_space<vmem>>, vector<2x128xf32>
    tpu.vector_store %arg11[%c0_65, %c0_66], %136 {strides = array<i32>} : memref<2x128xf32, #tpu.memory_space<vmem>>, vector<2x128xf32>,
    %c0_67 = arith.constant 0 : index
    %c0_68 = arith.constant 0 : index
    %138 = vector.load %arg11[%c0_67, %c0_68] : memref<2x128xf32, #tpu.memory_space<vmem>>, vector<2x32xf32>
    tpu.vector_store %arg11[%c0_67, %c0_68], %128 {strides = array<i32>} : memref<2x128xf32, #tpu.memory_space<vmem>>, vector<2x32xf32>,
    %c0_69 = arith.constant 0 : index
    %c32_70 = arith.constant 32 : index
    %139 = vector.load %arg11[%c0_69, %c32_70] : memref<2x128xf32, #tpu.memory_space<vmem>>, vector<2x4xf32>
    tpu.vector_store %arg11[%c0_69, %c32_70], %135 {strides = array<i32>} : memref<2x128xf32, #tpu.memory_space<vmem>>, vector<2x4xf32>,
    return
  }
}

</mosaic_0001>

<llo_original>
// kernel: _forward_impl.1
$region0: #{_forward_impl.1}
  #allocation0 [shape = 'u32[]', space=smem, size = 0x4, offset = 0x4, fixed_abs, tag = 'smem constant byte address 0x4 - core index']
  #allocation1 [shape = 'u32[144,128]{1,0:T(1,128)}', space=vmem, size = 0x12000, scoped, tag = 'internal scratch']
  %s0 = inlined_call_operand.vmem [shape: f32[2,8,32], index: 0, kind: input, shape index: {}]
  %s1 = inlined_call_operand.vmem [shape: f32[2,32], index: 1, kind: input, shape index: {}]
  %s2 = inlined_call_operand.vmem [shape: s32[2,8,8], index: 2, kind: input, shape index: {}]
  %s3 = inlined_call_operand.vmem [shape: s32[2,8,8], index: 3, kind: input, shape index: {}]
  %s4 = inlined_call_operand.vmem [shape: f32[6,32], index: 4, kind: input, shape index: {}]
  %s5 = inlined_call_operand.vmem [shape: f32[2,32,32], index: 5, kind: input, shape index: {}]
  %s6 = inlined_call_operand.vmem [shape: f32[2,32], index: 6, kind: input, shape index: {}]
  %s7 = inlined_call_operand.vmem [shape: f32[64,32], index: 7, kind: input, shape index: {}]
  %s8 = inlined_call_operand.vmem [shape: f32[1,32], index: 8, kind: input, shape index: {}]
  %s9 = inlined_call_operand.vmem [shape: f32[32,4], index: 9, kind: input, shape index: {}]
  %s10 = inlined_call_operand.vmem [shape: f32[1,4], index: 10, kind: input, shape index: {}]
  %s11 = inlined_call_operand.vmem [shape: f32[2,128], index: 11, kind: output, shape index: {}]
  %s12 = sld [smem:[#allocation0]]
  $region54: #{_forward_impl.1} parent=0
    _
  %s14 = ssub.s32 1, %s12
  %s15 = scalar_select 0, %s14, %s12
  // Predicated region
  $region2: #{_forward_impl.1} parent=0 // pred_check
    _
  $region3: #{_forward_impl.1} parent=0 // pred_check_branch
    %17 = sbr.rel (0) target = $region5
  $region4: #{_forward_impl.1} parent=0 // pred_region
    _
  $region5: #{_forward_impl.1} parent=0 // pred_fallthru
    _
  // Predicated region
  $region6: #{_forward_impl.1} parent=0 // pred_check
    _
  $region7: #{_forward_impl.1} parent=0 // pred_check_branch
    %19 = sbr.rel (0) target = $region9
  $region8: #{_forward_impl.1} parent=0 // pred_region
    _
  $region9: #{_forward_impl.1} parent=0 // pred_fallthru
    _
  // Predicated region
  $region10: #{_forward_impl.1} parent=0 // pred_check
    _
  $region11: #{_forward_impl.1} parent=0 // pred_check_branch
    %21 = sbr.rel (0) target = $region13
  $region12: #{_forward_impl.1} parent=0 // pred_region
    _
  $region13: #{_forward_impl.1} parent=0 // pred_fallthru
    _
  // Predicated region
  $region14: #{_forward_impl.1} parent=0 // pred_check
    _
  $region15: #{_forward_impl.1} parent=0 // pred_check_branch
    %23 = sbr.rel (0) target = $region17
  $region16: #{_forward_impl.1} parent=0 // pred_region
    _
  $region17: #{_forward_impl.1} parent=0 // pred_fallthru
    _
  // Predicated region
  $region18: #{_forward_impl.1} parent=0 // pred_check
    _
  $region19: #{_forward_impl.1} parent=0 // pred_check_branch
    %25 = sbr.rel (0) target = $region21
  $region20: #{_forward_impl.1} parent=0 // pred_region
    _
  $region21: #{_forward_impl.1} parent=0 // pred_fallthru
    _
  // Predicated region
  $region22: #{_forward_impl.1} parent=0 // pred_check
    _
  $region23: #{_forward_impl.1} parent=0 // pred_check_branch
    %27 = sbr.rel (0) target = $region25
  $region24: #{_forward_impl.1} parent=0 // pred_region
    _
  $region25: #{_forward_impl.1} parent=0 // pred_fallthru
    _
  // Predicated region
  $region26: #{_forward_impl.1} parent=0 // pred_check
    _
  $region27: #{_forward_impl.1} parent=0 // pred_check_branch
    %29 = sbr.rel (0) target = $region29
  $region28: #{_forward_impl.1} parent=0 // pred_region
    _
  $region29: #{_forward_impl.1} parent=0 // pred_fallthru
    _
  // Predicated region
  $region30: #{_forward_impl.1} parent=0 // pred_check
    _
  $region31: #{_forward_impl.1} parent=0 // pred_check_branch
    %31 = sbr.rel (0) target = $region33
  $region32: #{_forward_impl.1} parent=0 // pred_region
    _
  $region33: #{_forward_impl.1} parent=0 // pred_fallthru
    _
  // Predicated region
  $region34: #{_forward_impl.1} parent=0 // pred_check
    _
  $region35: #{_forward_impl.1} parent=0 // pred_check_branch
    %33 = sbr.rel (0) target = $region37
  $region36: #{_forward_impl.1} parent=0 // pred_region
    _
  $region37: #{_forward_impl.1} parent=0 // pred_fallthru
    _
  // Predicated region
  $region38: #{_forward_impl.1} parent=0 // pred_check
    _
  $region39: #{_forward_impl.1} parent=0 // pred_check_branch
    %35 = sbr.rel (0) target = $region41
  $region40: #{_forward_impl.1} parent=0 // pred_region
    _
  $region41: #{_forward_impl.1} parent=0 // pred_fallthru
    _
  // Predicated region
  $region42: #{_forward_impl.1} parent=0 // pred_check
    _
  $region43: #{_forward_impl.1} parent=0 // pred_check_branch
    %37 = sbr.rel (0) target = $region45
  $region44: #{_forward_impl.1} parent=0 // pred_region
    _
  $region45: #{_forward_impl.1} parent=0 // pred_fallthru
    _
  %v39 = vld [vmem:[%s0] sm:$0xff]
  %v40 = vld [vmem:[%s0 + $0x8] sm:$0xff]
  %v41 = vld [vmem:[%s2] sm:$0xff]
  %v42 = vld [vmem:[%s2 + $0x8] sm:$0xff]
  %v43 = vld [vmem:[%s3] sm:$0xff]
  %v44 = vld [vmem:[%s3 + $0x8] sm:$0xff]
  %v45 = vld [vmem:[%s4] sm:$0x3f]
  %v46 = vlaneseq
  %v47 = vand.u32 %v46, 127
  %v48 = vlaneseq
  %v49 = vshrl.u32 %v48, 7
  %v50 = vsub.s32 0, %v49
  %v51 = vrot.slane %v41, %v50
  %53 = vbcast.lane.b32.xlu0 %v51, 256
  %v54 = vpop.permute.xlu0 %53
  %v55 = vlaneseq
  %v56 = vshrl.u32 %v55, 7
  %v57 = vsub.s32 1, %v56
  %v58 = vrot.slane %v41, %v57
  %60 = vbcast.lane.b32.xlu0 %v58, 256
  %v61 = vpop.permute.xlu0 %60
  %v62 = vlaneseq
  %v63 = vshrl.u32 %v62, 7
  %v64 = vsub.s32 2, %v63
  %v65 = vrot.slane %v41, %v64
  %67 = vbcast.lane.b32.xlu0 %v65, 256
  %v68 = vpop.permute.xlu0 %67
  %v69 = vlaneseq
  %v70 = vshrl.u32 %v69, 7
  %v71 = vsub.s32 3, %v70
  %v72 = vrot.slane %v41, %v71
  %74 = vbcast.lane.b32.xlu0 %v72, 256
  %v75 = vpop.permute.xlu0 %74
  %v76 = vlaneseq
  %v77 = vshrl.u32 %v76, 7
  %v78 = vsub.s32 4, %v77
  %v79 = vrot.slane %v41, %v78
  %81 = vbcast.lane.b32.xlu0 %v79, 256
  %v82 = vpop.permute.xlu0 %81
  %v83 = vlaneseq
  %v84 = vshrl.u32 %v83, 7
  %v85 = vsub.s32 5, %v84
  %v86 = vrot.slane %v41, %v85
  %88 = vbcast.lane.b32.xlu0 %v86, 256
  %v89 = vpop.permute.xlu0 %88
  %v90 = vlaneseq
  %v91 = vshrl.u32 %v90, 7
  %v92 = vsub.s32 6, %v91
  %v93 = vrot.slane %v41, %v92
  %95 = vbcast.lane.b32.xlu0 %v93, 256
  %v96 = vpop.permute.xlu0 %95
  %v97 = vlaneseq
  %v98 = vshrl.u32 %v97, 7
  %v99 = vsub.s32 7, %v98
  %v100 = vrot.slane %v41, %v99
  %102 = vbcast.lane.b32.xlu0 %v100, 256
  %v103 = vpop.permute.xlu0 %102
  %v104 = vlaneseq
  %v105 = vshrl.u32 %v104, 7
  %v106 = vsub.s32 0, %v105
  %v107 = vrot.slane %v42, %v106
  %109 = vbcast.lane.b32.xlu0 %v107, 256
  %v110 = vpop.permute.xlu0 %109
  %v111 = vlaneseq
  %v112 = vshrl.u32 %v111, 7
  %v113 = vsub.s32 1, %v112
  %v114 = vrot.slane %v42, %v113
  %116 = vbcast.lane.b32.xlu0 %v114, 256
  %v117 = vpop.permute.xlu0 %116
  %v118 = vlaneseq
  %v119 = vshrl.u32 %v118, 7
  %v120 = vsub.s32 2, %v119
  %v121 = vrot.slane %v42, %v120
  %123 = vbcast.lane.b32.xlu0 %v121, 256
  %v124 = vpop.permute.xlu0 %123
  %v125 = vlaneseq
  %v126 = vshrl.u32 %v125, 7
  %v127 = vsub.s32 3, %v126
  %v128 = vrot.slane %v42, %v127
  %130 = vbcast.lane.b32.xlu0 %v128, 256
  %v131 = vpop.permute.xlu0 %130
  %v132 = vlaneseq
  %v133 = vshrl.u32 %v132, 7
  %v134 = vsub.s32 4, %v133
  %v135 = vrot.slane %v42, %v134
  %137 = vbcast.lane.b32.xlu0 %v135, 256
  %v138 = vpop.permute.xlu0 %137
  %v139 = vlaneseq
  %v140 = vshrl.u32 %v139, 7
  %v141 = vsub.s32 5, %v140
  %v142 = vrot.slane %v42, %v141
  %144 = vbcast.lane.b32.xlu0 %v142, 256
  %v145 = vpop.permute.xlu0 %144
  %v146 = vlaneseq
  %v147 = vshrl.u32 %v146, 7
  %v148 = vsub.s32 6, %v147
  %v149 = vrot.slane %v42, %v148
  %151 = vbcast.lane.b32.xlu0 %v149, 256
  %v152 = vpop.permute.xlu0 %151
  %v153 = vlaneseq
  %v154 = vshrl.u32 %v153, 7
  %v155 = vsub.s32 7, %v154
  %v156 = vrot.slane %v42, %v155
  %158 = vbcast.lane.b32.xlu0 %v156, 256
  %v159 = vpop.permute.xlu0 %158
  %vm160 = vcmp.eq.s32.totalorder %v54, %v47
  %vm161 = vcmp.eq.s32.totalorder %v61, %v47
  %vm162 = vcmp.eq.s32.totalorder %v68, %v47
  %vm163 = vcmp.eq.s32.totalorder %v75, %v47
  %vm164 = vcmp.eq.s32.totalorder %v82, %v47
  %vm165 = vcmp.eq.s32.totalorder %v89, %v47
  %vm166 = vcmp.eq.s32.totalorder %v96, %v47
  %vm167 = vcmp.eq.s32.totalorder %v103, %v47
  %vm168 = vcmp.eq.s32.totalorder %v110, %v47
  %vm169 = vcmp.eq.s32.totalorder %v117, %v47
  %vm170 = vcmp.eq.s32.totalorder %v124, %v47
  %vm171 = vcmp.eq.s32.totalorder %v131, %v47
  %vm172 = vcmp.eq.s32.totalorder %v138, %v47
  %vm173 = vcmp.eq.s32.totalorder %v145, %v47
  %vm174 = vcmp.eq.s32.totalorder %v152, %v47
  %vm175 = vcmp.eq.s32.totalorder %v159, %v47
  %v176 = vsel %vm160, 1, 0
  %v177 = vsel %vm161, 1, 0
  %v178 = vsel %vm162, 1, 0
  %v179 = vsel %vm163, 1, 0
  %v180 = vsel %vm164, 1, 0
  %v181 = vsel %vm165, 1, 0
  %v182 = vsel %vm166, 1, 0
  %v183 = vsel %vm167, 1, 0
  %v184 = vsel %vm168, 1, 0
  %v185 = vsel %vm169, 1, 0
  %v186 = vsel %vm170, 1, 0
  %v187 = vsel %vm171, 1, 0
  %v188 = vsel %vm172, 1, 0
  %v189 = vsel %vm173, 1, 0
  %v190 = vsel %vm174, 1, 0
  %v191 = vsel %vm175, 1, 0
  %v192 = vcvt.s32.f32 %v176
  %v193 = vcvt.s32.f32 %v177
  %v194 = vcvt.s32.f32 %v178
  %v195 = vcvt.s32.f32 %v179
  %v196 = vcvt.s32.f32 %v180
  %v197 = vcvt.s32.f32 %v181
  %v198 = vcvt.s32.f32 %v182
  %v199 = vcvt.s32.f32 %v183
  %v200 = vcvt.s32.f32 %v184
  %v201 = vcvt.s32.f32 %v185
  %v202 = vcvt.s32.f32 %v186
  %v203 = vcvt.s32.f32 %v187
  %v204 = vcvt.s32.f32 %v188
  %v205 = vcvt.s32.f32 %v189
  %v206 = vcvt.s32.f32 %v190
  %v207 = vcvt.s32.f32 %v191
  %v208 = vlaneseq
  %v209 = vshrl.u32 %v208, 7
  %v210 = vsub.s32 0, %v209
  %v211 = vrot.slane %v43, %v210
  %213 = vbcast.lane.b32.xlu0 %v211, 256
  %v214 = vpop.permute.xlu0 %213
  %v215 = vlaneseq
  %v216 = vshrl.u32 %v215, 7
  %v217 = vsub.s32 1, %v216
  %v218 = vrot.slane %v43, %v217
  %220 = vbcast.lane.b32.xlu0 %v218, 256
  %v221 = vpop.permute.xlu0 %220
  %v222 = vlaneseq
  %v223 = vshrl.u32 %v222, 7
  %v224 = vsub.s32 2, %v223
  %v225 = vrot.slane %v43, %v224
  %227 = vbcast.lane.b32.xlu0 %v225, 256
  %v228 = vpop.permute.xlu0 %227
  %v229 = vlaneseq
  %v230 = vshrl.u32 %v229, 7
  %v231 = vsub.s32 3, %v230
  %v232 = vrot.slane %v43, %v231
  %234 = vbcast.lane.b32.xlu0 %v232, 256
  %v235 = vpop.permute.xlu0 %234
  %v236 = vlaneseq
  %v237 = vshrl.u32 %v236, 7
  %v238 = vsub.s32 4, %v237
  %v239 = vrot.slane %v43, %v238
  %241 = vbcast.lane.b32.xlu0 %v239, 256
  %v242 = vpop.permute.xlu0 %241
  %v243 = vlaneseq
  %v244 = vshrl.u32 %v243, 7
  %v245 = vsub.s32 5, %v244
  %v246 = vrot.slane %v43, %v245
  %248 = vbcast.lane.b32.xlu0 %v246, 256
  %v249 = vpop.permute.xlu0 %248
  %v250 = vlaneseq
  %v251 = vshrl.u32 %v250, 7
  %v252 = vsub.s32 6, %v251
  %v253 = vrot.slane %v43, %v252
  %255 = vbcast.lane.b32.xlu0 %v253, 256
  %v256 = vpop.permute.xlu0 %255
  %v257 = vlaneseq
  %v258 = vshrl.u32 %v257, 7
  %v259 = vsub.s32 7, %v258
  %v260 = vrot.slane %v43, %v259
  %262 = vbcast.lane.b32.xlu0 %v260, 256
  %v263 = vpop.permute.xlu0 %262
  %v264 = vlaneseq
  %v265 = vshrl.u32 %v264, 7
  %v266 = vsub.s32 0, %v265
  %v267 = vrot.slane %v44, %v266
  %269 = vbcast.lane.b32.xlu0 %v267, 256
  %v270 = vpop.permute.xlu0 %269
  %v271 = vlaneseq
  %v272 = vshrl.u32 %v271, 7
  %v273 = vsub.s32 1, %v272
  %v274 = vrot.slane %v44, %v273
  %276 = vbcast.lane.b32.xlu0 %v274, 256
  %v277 = vpop.permute.xlu0 %276
  %v278 = vlaneseq
  %v279 = vshrl.u32 %v278, 7
  %v280 = vsub.s32 2, %v279
  %v281 = vrot.slane %v44, %v280
  %283 = vbcast.lane.b32.xlu0 %v281, 256
  %v284 = vpop.permute.xlu0 %283
  %v285 = vlaneseq
  %v286 = vshrl.u32 %v285, 7
  %v287 = vsub.s32 3, %v286
  %v288 = vrot.slane %v44, %v287
  %290 = vbcast.lane.b32.xlu0 %v288, 256
  %v291 = vpop.permute.xlu0 %290
  %v292 = vlaneseq
  %v293 = vshrl.u32 %v292, 7
  %v294 = vsub.s32 4, %v293
  %v295 = vrot.slane %v44, %v294
  %297 = vbcast.lane.b32.xlu0 %v295, 256
  %v298 = vpop.permute.xlu0 %297
  %v299 = vlaneseq
  %v300 = vshrl.u32 %v299, 7
  %v301 = vsub.s32 5, %v300
  %v302 = vrot.slane %v44, %v301
  %304 = vbcast.lane.b32.xlu0 %v302, 256
  %v305 = vpop.permute.xlu0 %304
  %v306 = vlaneseq
  %v307 = vshrl.u32 %v306, 7
  %v308 = vsub.s32 6, %v307
  %v309 = vrot.slane %v44, %v308
  %311 = vbcast.lane.b32.xlu0 %v309, 256
  %v312 = vpop.permute.xlu0 %311
  %v313 = vlaneseq
  %v314 = vshrl.u32 %v313, 7
  %v315 = vsub.s32 7, %v314
  %v316 = vrot.slane %v44, %v315
  %318 = vbcast.lane.b32.xlu0 %v316, 256
  %v319 = vpop.permute.xlu0 %318
  %vm320 = vcmp.eq.s32.totalorder %v214, %v47
  %vm321 = vcmp.eq.s32.totalorder %v221, %v47
  %vm322 = vcmp.eq.s32.totalorder %v228, %v47
  %vm323 = vcmp.eq.s32.totalorder %v235, %v47
  %vm324 = vcmp.eq.s32.totalorder %v242, %v47
  %vm325 = vcmp.eq.s32.totalorder %v249, %v47
  %vm326 = vcmp.eq.s32.totalorder %v256, %v47
  %vm327 = vcmp.eq.s32.totalorder %v263, %v47
  %vm328 = vcmp.eq.s32.totalorder %v270, %v47
  %vm329 = vcmp.eq.s32.totalorder %v277, %v47
  %vm330 = vcmp.eq.s32.totalorder %v284, %v47
  %vm331 = vcmp.eq.s32.totalorder %v291, %v47
  %vm332 = vcmp.eq.s32.totalorder %v298, %v47
  %vm333 = vcmp.eq.s32.totalorder %v305, %v47
  %vm334 = vcmp.eq.s32.totalorder %v312, %v47
  %vm335 = vcmp.eq.s32.totalorder %v319, %v47
  %v336 = vsel %vm320, 1, 0
  %v337 = vsel %vm321, 1, 0
  %v338 = vsel %vm322, 1, 0
  %v339 = vsel %vm323, 1, 0
  %v340 = vsel %vm324, 1, 0
  %v341 = vsel %vm325, 1, 0
  %v342 = vsel %vm326, 1, 0
  %v343 = vsel %vm327, 1, 0
  %v344 = vsel %vm328, 1, 0
  %v345 = vsel %vm329, 1, 0
  %v346 = vsel %vm330, 1, 0
  %v347 = vsel %vm331, 1, 0
  %v348 = vsel %vm332, 1, 0
  %v349 = vsel %vm333, 1, 0
  %v350 = vsel %vm334, 1, 0
  %v351 = vsel %vm335, 1, 0
  %v352 = vcvt.s32.f32 %v336
  %v353 = vcvt.s32.f32 %v337
  %v354 = vcvt.s32.f32 %v338
  %v355 = vcvt.s32.f32 %v339
  %v356 = vcvt.s32.f32 %v340
  %v357 = vcvt.s32.f32 %v341
  %v358 = vcvt.s32.f32 %v342
  %v359 = vcvt.s32.f32 %v343
  %v360 = vcvt.s32.f32 %v344
  %v361 = vcvt.s32.f32 %v345
  %v362 = vcvt.s32.f32 %v346
  %v363 = vcvt.s32.f32 %v347
  %v364 = vcvt.s32.f32 %v348
  %v365 = vcvt.s32.f32 %v349
  %v366 = vcvt.s32.f32 %v350
  %v367 = vcvt.s32.f32 %v351
  %vm368 = vcmask 48128
  %v370 = vsel %vm368, %v192, 0
  %v373 = vsel %vm368, %v193, 0
  %v376 = vsel %vm368, %v194, 0
  %v379 = vsel %vm368, %v195, 0
  %v382 = vsel %vm368, %v196, 0
  %v385 = vsel %vm368, %v197, 0
  %v388 = vsel %vm368, %v198, 0
  %v391 = vsel %vm368, %v199, 0
  %v394 = vsel %vm368, %v200, 0
  %v397 = vsel %vm368, %v201, 0
  %v400 = vsel %vm368, %v202, 0
  %v403 = vsel %vm368, %v203, 0
  %v406 = vsel %vm368, %v204, 0
  %v409 = vsel %vm368, %v205, 0
  %v412 = vsel %vm368, %v206, 0
  %v415 = vsel %vm368, %v207, 0
  %vm417 = vcmask 1045504
  %v419 = vsel %vm417, %v45, 0
  %421 = vmatprep.subr.mxu0 0.0
  %422 = vmatpush1.msra.mxu0 %v419
  %423 = vmatprep.subr.mxu0 0.0
  %424 = vmatpush1.msra.mxu0 0.0
  %425 = vmatprep.subr.mxu0 0.0
  %426 = vmatpush1.msra.mxu0 0.0
  %427 = vmatprep.subr.mxu0 0.0
  %428 = vmatpush1.msra.mxu0 0.0
  %429 = vmatprep.subr.mxu0 0.0
  %430 = vmatpush1.msra.mxu0 0.0
  %431 = vmatprep.subr.mxu0 0.0
  %432 = vmatpush1.msra.mxu0 0.0
  %433 = vmatprep.subr.mxu0 0.0
  %434 = vmatpush1.msra.mxu0 0.0
  %435 = vmatprep.subr.mxu0 0.0
  %436 = vmatpush1.msra.mxu0 0.0
  %437 = vmatprep.subr.mxu0 0.0
  %438 = vmatpush1.msra.mxu0 0.0
  %439 = vmatprep.subr.mxu0 0.0
  %440 = vmatpush1.msra.mxu0 0.0
  %441 = vmatprep.subr.mxu0 0.0
  %442 = vmatpush1.msra.mxu0 0.0
  %443 = vmatprep.subr.mxu0 0.0
  %444 = vmatpush1.msra.mxu0 0.0
  %445 = vmatprep.subr.mxu0 0.0
  %446 = vmatpush1.msra.mxu0 0.0
  %447 = vmatprep.subr.mxu0 0.0
  %448 = vmatpush1.msra.mxu0 0.0
  %449 = vmatprep.subr.mxu0 0.0
  %450 = vmatpush1.msra.mxu0 0.0
  %451 = vmatprep.subr.mxu0 0.0
  %452 = vmatpush1.msra.mxu0 0.0
  %453 = vmatprep.subr.mxu0 0.0
  %454 = vmatpush1.msra.mxu0 0.0
  %455 = vmatprep.subr.mxu0 0.0
  %456 = vmatpush1.msra.mxu0 0.0
  %457 = vmatprep.subr.mxu0 0.0
  %458 = vmatpush1.msra.mxu0 0.0
  %459 = vmatprep.subr.mxu0 0.0
  %460 = vmatpush1.msra.mxu0 0.0
  %461 = vmatprep.subr.mxu0 0.0
  %462 = vmatpush1.msra.mxu0 0.0
  %463 = vmatprep.subr.mxu0 0.0
  %464 = vmatpush1.msra.mxu0 0.0
  %465 = vmatprep.subr.mxu0 0.0
  %466 = vmatpush1.msra.mxu0 0.0
  %467 = vmatprep.subr.mxu0 0.0
  %468 = vmatpush1.msra.mxu0 0.0
  %469 = vmatprep.subr.mxu0 0.0
  %470 = vmatpush1.msra.mxu0 0.0
  %471 = vmatprep.subr.mxu0 0.0
  %472 = vmatpush1.msra.mxu0 0.0
  %473 = vmatprep.subr.mxu0 0.0
  %474 = vmatpush1.msra.mxu0 0.0
  %475 = vmatprep.subr.mxu0 0.0
  %476 = vmatpush1.msra.mxu0 0.0
  %477 = vmatprep.subr.mxu0 0.0
  %478 = vmatpush1.msra.mxu0 0.0
  %479 = vmatprep.subr.mxu0 0.0
  %480 = vmatpush1.msra.mxu0 0.0
  %481 = vmatprep.subr.mxu0 0.0
  %482 = vmatpush1.msra.mxu0 0.0
  %483 = vmatprep.subr.mxu0 0.0
  %484 = vmatpush1.msra.mxu0 0.0
  %485 = vmatprep.mubr.f32.mxu0 0.0
  %486 = vmatmul.mubr.f32.gmra.mrb[0].mxu0 %v370
  %v487 = vpop.f32.mrb[0].mxu0
  %v488 = vadd.f32 0.0, %v487
  %v489 = vpop.f32.mrb[0].mxu0
  %490 = vmatprep.mubr.f32.mxu0 0.0
  %491 = vmatmul.mubr.f32.gmra.mrb[0].mxu0 %v373
  %v492 = vpop.f32.mrb[0].mxu0
  %v493 = vadd.f32 0.0, %v492
  %v494 = vpop.f32.mrb[0].mxu0
  %495 = vmatprep.mubr.f32.mxu0 0.0
  %496 = vmatmul.mubr.f32.gmra.mrb[0].mxu0 %v376
  %v497 = vpop.f32.mrb[0].mxu0
  %v498 = vadd.f32 0.0, %v497
  %v499 = vpop.f32.mrb[0].mxu0
  %500 = vmatprep.mubr.f32.mxu0 0.0
  %501 = vmatmul.mubr.f32.gmra.mrb[0].mxu0 %v379
  %v502 = vpop.f32.mrb[0].mxu0
  %v503 = vadd.f32 0.0, %v502
  %v504 = vpop.f32.mrb[0].mxu0
  %505 = vmatprep.mubr.f32.mxu0 0.0
  %506 = vmatmul.mubr.f32.gmra.mrb[0].mxu0 %v382
  %v507 = vpop.f32.mrb[0].mxu0
  %v508 = vadd.f32 0.0, %v507
  %v509 = vpop.f32.mrb[0].mxu0
  %510 = vmatprep.mubr.f32.mxu0 0.0
  %511 = vmatmul.mubr.f32.gmra.mrb[0].mxu0 %v385
  %v512 = vpop.f32.mrb[0].mxu0
  %v513 = vadd.f32 0.0, %v512
  %v514 = vpop.f32.mrb[0].mxu0
  %515 = vmatprep.mubr.f32.mxu0 0.0
  %516 = vmatmul.mubr.f32.gmra.mrb[0].mxu0 %v388
  %v517 = vpop.f32.mrb[0].mxu0
  %v518 = vadd.f32 0.0, %v517
  %v519 = vpop.f32.mrb[0].mxu0
  %520 = vmatprep.mubr.f32.mxu0 0.0
  %521 = vmatmul.mubr.f32.gmra.mrb[0].mxu0 %v391
  %v522 = vpop.f32.mrb[0].mxu0
  %v523 = vadd.f32 0.0, %v522
  %v524 = vpop.f32.mrb[0].mxu0
  %525 = vmatprep.mubr.f32.mxu0 0.0
  %526 = vmatmul.mubr.f32.gmra.mrb[0].mxu0 %v394
  %v527 = vpop.f32.mrb[0].mxu0
  %v528 = vadd.f32 0.0, %v527
  %v529 = vpop.f32.mrb[0].mxu0
  %530 = vmatprep.mubr.f32.mxu0 0.0
  %531 = vmatmul.mubr.f32.gmra.mrb[0].mxu0 %v397
  %v532 = vpop.f32.mrb[0].mxu0
  %v533 = vadd.f32 0.0, %v532
  %v534 = vpop.f32.mrb[0].mxu0
  %535 = vmatprep.mubr.f32.mxu0 0.0
  %536 = vmatmul.mubr.f32.gmra.mrb[0].mxu0 %v400
  %v537 = vpop.f32.mrb[0].mxu0
  %v538 = vadd.f32 0.0, %v537
  %v539 = vpop.f32.mrb[0].mxu0
  %540 = vmatprep.mubr.f32.mxu0 0.0
  %541 = vmatmul.mubr.f32.gmra.mrb[0].mxu0 %v403
  %v542 = vpop.f32.mrb[0].mxu0
  %v543 = vadd.f32 0.0, %v542
  %v544 = vpop.f32.mrb[0].mxu0
  %545 = vmatprep.mubr.f32.mxu0 0.0
  %546 = vmatmul.mubr.f32.gmra.mrb[0].mxu0 %v406
  %v547 = vpop.f32.mrb[0].mxu0
  %v548 = vadd.f32 0.0, %v547
  %v549 = vpop.f32.mrb[0].mxu0
  %550 = vmatprep.mubr.f32.mxu0 0.0
  %551 = vmatmul.mubr.f32.gmra.mrb[0].mxu0 %v409
  %v552 = vpop.f32.mrb[0].mxu0
  %v553 = vadd.f32 0.0, %v552
  %v554 = vpop.f32.mrb[0].mxu0
  %555 = vmatprep.mubr.f32.mxu0 0.0
  %556 = vmatmul.mubr.f32.gmra.mrb[0].mxu0 %v412
  %v557 = vpop.f32.mrb[0].mxu0
  %v558 = vadd.f32 0.0, %v557
  %v559 = vpop.f32.mrb[0].mxu0
  %560 = vmatprep.mubr.f32.mxu0 0.0
  %561 = vmatmul.mubr.f32.gmra.mrb[0].mxu0 %v415
  %v562 = vpop.f32.mrb[0].mxu0
  %v563 = vadd.f32 0.0, %v562
  %v564 = vpop.f32.mrb[0].mxu0
  %565 = vdwg.mxu0
  %v567 = vsel %vm368, %v352, 0
  %v570 = vsel %vm368, %v353, 0
  %v573 = vsel %vm368, %v354, 0
  %v576 = vsel %vm368, %v355, 0
  %v579 = vsel %vm368, %v356, 0
  %v582 = vsel %vm368, %v357, 0
  %v585 = vsel %vm368, %v358, 0
  %v588 = vsel %vm368, %v359, 0
  %v591 = vsel %vm368, %v360, 0
  %v594 = vsel %vm368, %v361, 0
  %v597 = vsel %vm368, %v362, 0
  %v600 = vsel %vm368, %v363, 0
  %v603 = vsel %vm368, %v364, 0
  %v606 = vsel %vm368, %v365, 0
  %v609 = vsel %vm368, %v366, 0
  %v612 = vsel %vm368, %v367, 0
  %614 = vmatprep.subr.mxu0 0.0
  %615 = vmatpush1.msra.mxu0 %v419
  %616 = vmatprep.subr.mxu0 0.0
  %617 = vmatpush1.msra.mxu0 0.0
  %618 = vmatprep.subr.mxu0 0.0
  %619 = vmatpush1.msra.mxu0 0.0
  %620 = vmatprep.subr.mxu0 0.0
  %621 = vmatpush1.msra.mxu0 0.0
  %622 = vmatprep.subr.mxu0 0.0
  %623 = vmatpush1.msra.mxu0 0.0
  %624 = vmatprep.subr.mxu0 0.0
  %625 = vmatpush1.msra.mxu0 0.0
  %626 = vmatprep.subr.mxu0 0.0
  %627 = vmatpush1.msra.mxu0 0.0
  %628 = vmatprep.subr.mxu0 0.0
  %629 = vmatpush1.msra.mxu0 0.0
  %630 = vmatprep.subr.mxu0 0.0
  %631 = vmatpush1.msra.mxu0 0.0
  %632 = vmatprep.subr.mxu0 0.0
  %633 = vmatpush1.msra.mxu0 0.0
  %634 = vmatprep.subr.mxu0 0.0
  %635 = vmatpush1.msra.mxu0 0.0
  %636 = vmatprep.subr.mxu0 0.0
  %637 = vmatpush1.msra.mxu0 0.0
  %638 = vmatprep.subr.mxu0 0.0
  %639 = vmatpush1.msra.mxu0 0.0
  %640 = vmatprep.subr.mxu0 0.0
  %641 = vmatpush1.msra.mxu0 0.0
  %642 = vmatprep.subr.mxu0 0.0
  %643 = vmatpush1.msra.mxu0 0.0
  %644 = vmatprep.subr.mxu0 0.0
  %645 = vmatpush1.msra.mxu0 0.0
  %646 = vmatprep.subr.mxu0 0.0
  %647 = vmatpush1.msra.mxu0 0.0
  %648 = vmatprep.subr.mxu0 0.0
  %649 = vmatpush1.msra.mxu0 0.0
  %650 = vmatprep.subr.mxu0 0.0
  %651 = vmatpush1.msra.mxu0 0.0
  %652 = vmatprep.subr.mxu0 0.0
  %653 = vmatpush1.msra.mxu0 0.0
  %654 = vmatprep.subr.mxu0 0.0
  %655 = vmatpush1.msra.mxu0 0.0
  %656 = vmatprep.subr.mxu0 0.0
  %657 = vmatpush1.msra.mxu0 0.0
  %658 = vmatprep.subr.mxu0 0.0
  %659 = vmatpush1.msra.mxu0 0.0
  %660 = vmatprep.subr.mxu0 0.0
  %661 = vmatpush1.msra.mxu0 0.0
  %662 = vmatprep.subr.mxu0 0.0
  %663 = vmatpush1.msra.mxu0 0.0
  %664 = vmatprep.subr.mxu0 0.0
  %665 = vmatpush1.msra.mxu0 0.0
  %666 = vmatprep.subr.mxu0 0.0
  %667 = vmatpush1.msra.mxu0 0.0
  %668 = vmatprep.subr.mxu0 0.0
  %669 = vmatpush1.msra.mxu0 0.0
  %670 = vmatprep.subr.mxu0 0.0
  %671 = vmatpush1.msra.mxu0 0.0
  %672 = vmatprep.subr.mxu0 0.0
  %673 = vmatpush1.msra.mxu0 0.0
  %674 = vmatprep.subr.mxu0 0.0
  %675 = vmatpush1.msra.mxu0 0.0
  %676 = vmatprep.subr.mxu0 0.0
  %677 = vmatpush1.msra.mxu0 0.0
  %678 = vmatprep.mubr.f32.mxu0 0.0
  %679 = vmatmul.mubr.f32.gmra.mrb[0].mxu0 %v567
  %v680 = vpop.f32.mrb[0].mxu0
  %v681 = vadd.f32 0.0, %v680
  %v682 = vpop.f32.mrb[0].mxu0
  %683 = vmatprep.mubr.f32.mxu0 0.0
  %684 = vmatmul.mubr.f32.gmra.mrb[0].mxu0 %v570
  %v685 = vpop.f32.mrb[0].mxu0
  %v686 = vadd.f32 0.0, %v685
  %v687 = vpop.f32.mrb[0].mxu0
  %688 = vmatprep.mubr.f32.mxu0 0.0
  %689 = vmatmul.mubr.f32.gmra.mrb[0].mxu0 %v573
  %v690 = vpop.f32.mrb[0].mxu0
  %v691 = vadd.f32 0.0, %v690
  %v692 = vpop.f32.mrb[0].mxu0
  %693 = vmatprep.mubr.f32.mxu0 0.0
  %694 = vmatmul.mubr.f32.gmra.mrb[0].mxu0 %v576
  %v695 = vpop.f32.mrb[0].mxu0
  %v696 = vadd.f32 0.0, %v695
  %v697 = vpop.f32.mrb[0].mxu0
  %698 = vmatprep.mubr.f32.mxu0 0.0
  %699 = vmatmul.mubr.f32.gmra.mrb[0].mxu0 %v579
  %v700 = vpop.f32.mrb[0].mxu0
  %v701 = vadd.f32 0.0, %v700
  %v702 = vpop.f32.mrb[0].mxu0
  %703 = vmatprep.mubr.f32.mxu0 0.0
  %704 = vmatmul.mubr.f32.gmra.mrb[0].mxu0 %v582
  %v705 = vpop.f32.mrb[0].mxu0
  %v706 = vadd.f32 0.0, %v705
  %v707 = vpop.f32.mrb[0].mxu0
  %708 = vmatprep.mubr.f32.mxu0 0.0
  %709 = vmatmul.mubr.f32.gmra.mrb[0].mxu0 %v585
  %v710 = vpop.f32.mrb[0].mxu0
  %v711 = vadd.f32 0.0, %v710
  %v712 = vpop.f32.mrb[0].mxu0
  %713 = vmatprep.mubr.f32.mxu0 0.0
  %714 = vmatmul.mubr.f32.gmra.mrb[0].mxu0 %v588
  %v715 = vpop.f32.mrb[0].mxu0
  %v716 = vadd.f32 0.0, %v715
  %v717 = vpop.f32.mrb[0].mxu0
  %718 = vmatprep.mubr.f32.mxu0 0.0
  %719 = vmatmul.mubr.f32.gmra.mrb[0].mxu0 %v591
  %v720 = vpop.f32.mrb[0].mxu0
  %v721 = vadd.f32 0.0, %v720
  %v722 = vpop.f32.mrb[0].mxu0
  %723 = vmatprep.mubr.f32.mxu0 0.0
  %724 = vmatmul.mubr.f32.gmra.mrb[0].mxu0 %v594
  %v725 = vpop.f32.mrb[0].mxu0
  %v726 = vadd.f32 0.0, %v725
  %v727 = vpop.f32.mrb[0].mxu0
  %728 = vmatprep.mubr.f32.mxu0 0.0
  %729 = vmatmul.mubr.f32.gmra.mrb[0].mxu0 %v597
  %v730 = vpop.f32.mrb[0].mxu0
  %v731 = vadd.f32 0.0, %v730
  %v732 = vpop.f32.mrb[0].mxu0
  %733 = vmatprep.mubr.f32.mxu0 0.0
  %734 = vmatmul.mubr.f32.gmra.mrb[0].mxu0 %v600
  %v735 = vpop.f32.mrb[0].mxu0
  %v736 = vadd.f32 0.0, %v735
  %v737 = vpop.f32.mrb[0].mxu0
  %738 = vmatprep.mubr.f32.mxu0 0.0
  %739 = vmatmul.mubr.f32.gmra.mrb[0].mxu0 %v603
  %v740 = vpop.f32.mrb[0].mxu0
  %v741 = vadd.f32 0.0, %v740
  %v742 = vpop.f32.mrb[0].mxu0
  %743 = vmatprep.mubr.f32.mxu0 0.0
  %744 = vmatmul.mubr.f32.gmra.mrb[0].mxu0 %v606
  %v745 = vpop.f32.mrb[0].mxu0
  %v746 = vadd.f32 0.0, %v745
  %v747 = vpop.f32.mrb[0].mxu0
  %748 = vmatprep.mubr.f32.mxu0 0.0
  %749 = vmatmul.mubr.f32.gmra.mrb[0].mxu0 %v609
  %v750 = vpop.f32.mrb[0].mxu0
  %v751 = vadd.f32 0.0, %v750
  %v752 = vpop.f32.mrb[0].mxu0
  %753 = vmatprep.mubr.f32.mxu0 0.0
  %754 = vmatmul.mubr.f32.gmra.mrb[0].mxu0 %v612
  %v755 = vpop.f32.mrb[0].mxu0
  %v756 = vadd.f32 0.0, %v755
  %v757 = vpop.f32.mrb[0].mxu0
  %758 = vdwg.mxu0
  %vm759 = vcmp.gt.s32.totalorder %v41, 0
  %vm760 = vcmp.gt.s32.totalorder %v42, 0
  %v761 = vmul.f32 %v488, %v681
  %v762 = vmul.f32 %v493, %v686
  %v763 = vmul.f32 %v498, %v691
  %v764 = vmul.f32 %v503, %v696
  %v765 = vmul.f32 %v508, %v701
  %v766 = vmul.f32 %v513, %v706
  %v767 = vmul.f32 %v518, %v711
  %v768 = vmul.f32 %v523, %v716
  %v769 = vmul.f32 %v528, %v721
  %v770 = vmul.f32 %v533, %v726
  %v771 = vmul.f32 %v538, %v731
  %v772 = vmul.f32 %v543, %v736
  %v773 = vmul.f32 %v548, %v741
  %v774 = vmul.f32 %v553, %v746
  %v775 = vmul.f32 %v558, %v751
  %v776 = vmul.f32 %v563, %v756
  %vm777 = vcmask 261120
  %v778 = vsel %vm777, %v761, 0.0
  %779 = vadd.xlane.f32.xlu0 %v778
  %v780 = vpop.xlane.xlu0 %779
  %v781 = vsel %vm777, %v762, 0.0
  %782 = vadd.xlane.f32.xlu0 %v781
  %v783 = vpop.xlane.xlu0 %782
  %v784 = vsel %vm777, %v763, 0.0
  %785 = vadd.xlane.f32.xlu0 %v784
  %v786 = vpop.xlane.xlu0 %785
  %v787 = vsel %vm777, %v764, 0.0
  %788 = vadd.xlane.f32.xlu0 %v787
  %v789 = vpop.xlane.xlu0 %788
  %v790 = vsel %vm777, %v765, 0.0
  %791 = vadd.xlane.f32.xlu0 %v790
  %v792 = vpop.xlane.xlu0 %791
  %v793 = vsel %vm777, %v766, 0.0
  %794 = vadd.xlane.f32.xlu0 %v793
  %v795 = vpop.xlane.xlu0 %794
  %v796 = vsel %vm777, %v767, 0.0
  %797 = vadd.xlane.f32.xlu0 %v796
  %v798 = vpop.xlane.xlu0 %797
  %v799 = vsel %vm777, %v768, 0.0
  %800 = vadd.xlane.f32.xlu0 %v799
  %v801 = vpop.xlane.xlu0 %800
  %v802 = vsel %vm777, %v769, 0.0
  %803 = vadd.xlane.f32.xlu0 %v802
  %v804 = vpop.xlane.xlu0 %803
  %v805 = vsel %vm777, %v770, 0.0
  %806 = vadd.xlane.f32.xlu0 %v805
  %v807 = vpop.xlane.xlu0 %806
  %v808 = vsel %vm777, %v771, 0.0
  %809 = vadd.xlane.f32.xlu0 %v808
  %v810 = vpop.xlane.xlu0 %809
  %v811 = vsel %vm777, %v772, 0.0
  %812 = vadd.xlane.f32.xlu0 %v811
  %v813 = vpop.xlane.xlu0 %812
  %v814 = vsel %vm777, %v773, 0.0
  %815 = vadd.xlane.f32.xlu0 %v814
  %v816 = vpop.xlane.xlu0 %815
  %v817 = vsel %vm777, %v774, 0.0
  %818 = vadd.xlane.f32.xlu0 %v817
  %v819 = vpop.xlane.xlu0 %818
  %v820 = vsel %vm777, %v775, 0.0
  %821 = vadd.xlane.f32.xlu0 %v820
  %v822 = vpop.xlane.xlu0 %821
  %v823 = vsel %vm777, %v776, 0.0
  %824 = vadd.xlane.f32.xlu0 %v823
  %v825 = vpop.xlane.xlu0 %824
  %v826 = vmul.f32 %v780, 0.17677669
  %v827 = vmul.f32 %v783, 0.17677669
  %v828 = vmul.f32 %v786, 0.17677669
  %v829 = vmul.f32 %v789, 0.17677669
  %v830 = vmul.f32 %v792, 0.17677669
  %v831 = vmul.f32 %v795, 0.17677669
  %v832 = vmul.f32 %v798, 0.17677669
  %v833 = vmul.f32 %v801, 0.17677669
  %v834 = vmul.f32 %v804, 0.17677669
  %v835 = vmul.f32 %v807, 0.17677669
  %v836 = vmul.f32 %v810, 0.17677669
  %v837 = vmul.f32 %v813, 0.17677669
  %v838 = vmul.f32 %v816, 0.17677669
  %v839 = vmul.f32 %v819, 0.17677669
  %v840 = vmul.f32 %v822, 0.17677669
  %v841 = vmul.f32 %v825, 0.17677669
  %v842 = vld [vmem:[%s5] sm:$0xff]
  %v843 = vld [vmem:[%s5 + $0x8] sm:$0xff]
  %v844 = vld [vmem:[%s5 + $0x10] sm:$0xff]
  %v845 = vld [vmem:[%s5 + $0x18] sm:$0xff]
  %v846 = vpack.c.bf16 %v843, %v842
  %v847 = vpack.c.bf16 %v845, %v844
  %v848 = vld [vmem:[%s6] sm:$0x1]
  %v849 = vpack.c.bf16 %v39, %v39
  %v850 = vpack.c.bf16 %v40, %v40
  %v852 = vsel %vm777, %v849, 0
  %854 = vmatprep.subr.bf16.mxu0 0
  %855 = vmatpush1.bf16.xpose.msra.mxu0 %v852
  %856 = vmatprep.subr.bf16.mxu0 0
  %857 = vmatpush1.bf16.xpose.msra.mxu0 0
  %858 = vmatprep.subr.bf16.mxu0 0
  %859 = vmatpush1.bf16.xpose.msra.mxu0 0
  %860 = vmatprep.subr.bf16.mxu0 0
  %861 = vmatpush1.bf16.xpose.msra.mxu0 0
  %862 = vmatprep.subr.bf16.mxu0 0
  %863 = vmatpush1.bf16.xpose.msra.mxu0 0
  %864 = vmatprep.subr.bf16.mxu0 0
  %865 = vmatpush1.bf16.xpose.msra.mxu0 0
  %866 = vmatprep.subr.bf16.mxu0 0
  %867 = vmatpush1.bf16.xpose.msra.mxu0 0
  %868 = vmatprep.subr.bf16.mxu0 0
  %869 = vmatpush1.bf16.xpose.msra.mxu0 0
  %870 = vmatprep.subr.bf16.mxu0 0
  %871 = vmatpush1.bf16.xpose.msra.mxu0 0
  %872 = vmatprep.subr.bf16.mxu0 0
  %873 = vmatpush1.bf16.xpose.msra.mxu0 0
  %874 = vmatprep.subr.bf16.mxu0 0
  %875 = vmatpush1.bf16.xpose.msra.mxu0 0
  %876 = vmatprep.subr.bf16.mxu0 0
  %877 = vmatpush1.bf16.xpose.msra.mxu0 0
  %878 = vmatprep.subr.bf16.mxu0 0
  %879 = vmatpush1.bf16.xpose.msra.mxu0 0
  %880 = vmatprep.subr.bf16.mxu0 0
  %881 = vmatpush1.bf16.xpose.msra.mxu0 0
  %882 = vmatprep.subr.bf16.mxu0 0
  %883 = vmatpush1.bf16.xpose.msra.mxu0 0
  %884 = vmatprep.subr.bf16.mxu0 0
  %885 = vmatpush1.bf16.xpose.msra.mxu0 0
  %886 = vmatprep.mubr.bf16.mxu0 0
  %887 = vmatmul.mubr.bf16.gmra.mrb[0].mxu0 %v852
  %v888 = vpop.f32.mrb[0].mxu0
  %v889 = vadd.f32 0.0, %v888
  %v890 = vpop.f32.mrb[0].mxu0
  %v891 = vpop.f32.mrb[0].mxu0
  %v892 = vpop.f32.mrb[0].mxu0
  %893 = vdwg.mxu0
  %v895 = vsel %vm777, %v850, 0
  %897 = vmatprep.subr.bf16.mxu0 0
  %898 = vmatpush1.bf16.xpose.msra.mxu0 %v895
  %899 = vmatprep.subr.bf16.mxu0 0
  %900 = vmatpush1.bf16.xpose.msra.mxu0 0
  %901 = vmatprep.subr.bf16.mxu0 0
  %902 = vmatpush1.bf16.xpose.msra.mxu0 0
  %903 = vmatprep.subr.bf16.mxu0 0
  %904 = vmatpush1.bf16.xpose.msra.mxu0 0
  %905 = vmatprep.subr.bf16.mxu0 0
  %906 = vmatpush1.bf16.xpose.msra.mxu0 0
  %907 = vmatprep.subr.bf16.mxu0 0
  %908 = vmatpush1.bf16.xpose.msra.mxu0 0
  %909 = vmatprep.subr.bf16.mxu0 0
  %910 = vmatpush1.bf16.xpose.msra.mxu0 0
  %911 = vmatprep.subr.bf16.mxu0 0
  %912 = vmatpush1.bf16.xpose.msra.mxu0 0
  %913 = vmatprep.subr.bf16.mxu0 0
  %914 = vmatpush1.bf16.xpose.msra.mxu0 0
  %915 = vmatprep.subr.bf16.mxu0 0
  %916 = vmatpush1.bf16.xpose.msra.mxu0 0
  %917 = vmatprep.subr.bf16.mxu0 0
  %918 = vmatpush1.bf16.xpose.msra.mxu0 0
  %919 = vmatprep.subr.bf16.mxu0 0
  %920 = vmatpush1.bf16.xpose.msra.mxu0 0
  %921 = vmatprep.subr.bf16.mxu0 0
  %922 = vmatpush1.bf16.xpose.msra.mxu0 0
  %923 = vmatprep.subr.bf16.mxu0 0
  %924 = vmatpush1.bf16.xpose.msra.mxu0 0
  %925 = vmatprep.subr.bf16.mxu0 0
  %926 = vmatpush1.bf16.xpose.msra.mxu0 0
  %927 = vmatprep.subr.bf16.mxu0 0
  %928 = vmatpush1.bf16.xpose.msra.mxu0 0
  %929 = vmatprep.mubr.bf16.mxu0 0
  %930 = vmatmul.mubr.bf16.gmra.mrb[0].mxu0 %v895
  %v931 = vpop.f32.mrb[0].mxu0
  %v932 = vadd.f32 0.0, %v931
  %v933 = vpop.f32.mrb[0].mxu0
  %v934 = vpop.f32.mrb[0].mxu0
  %v935 = vpop.f32.mrb[0].mxu0
  %936 = vdwg.mxu0
  %v937 = vmul.f32 %v889, 0.17677669
  %v938 = vmul.f32 %v932, 0.17677669
  %v955 = vlaneseq
  %v956 = vshrl.u32 %v955, 7
  %v957 = vsub.s32 %v47, %v956
  %v958 = vrot.slane %v826, %v957
  %v959 = vlaneseq
  %v960 = vshrl.u32 %v959, 7
  %v961 = vsub.s32 %v47, %v960
  %v962 = vrot.slane %v827, %v961
  %v963 = vlaneseq
  %v964 = vshrl.u32 %v963, 7
  %v965 = vsub.s32 %v47, %v964
  %v966 = vrot.slane %v828, %v965
  %v967 = vlaneseq
  %v968 = vshrl.u32 %v967, 7
  %v969 = vsub.s32 %v47, %v968
  %v970 = vrot.slane %v829, %v969
  %v971 = vlaneseq
  %v972 = vshrl.u32 %v971, 7
  %v973 = vsub.s32 %v47, %v972
  %v974 = vrot.slane %v830, %v973
  %v975 = vlaneseq
  %v976 = vshrl.u32 %v975, 7
  %v977 = vsub.s32 %v47, %v976
  %v978 = vrot.slane %v831, %v977
  %v979 = vlaneseq
  %v980 = vshrl.u32 %v979, 7
  %v981 = vsub.s32 %v47, %v980
  %v982 = vrot.slane %v832, %v981
  %v983 = vlaneseq
  %v984 = vshrl.u32 %v983, 7
  %v985 = vsub.s32 %v47, %v984
  %v986 = vrot.slane %v833, %v985
  %v987 = vlaneseq
  %v988 = vshrl.u32 %v987, 7
  %v989 = vsub.s32 %v47, %v988
  %v990 = vrot.slane %v834, %v989
  %v991 = vlaneseq
  %v992 = vshrl.u32 %v991, 7
  %v993 = vsub.s32 %v47, %v992
  %v994 = vrot.slane %v835, %v993
  %v995 = vlaneseq
  %v996 = vshrl.u32 %v995, 7
  %v997 = vsub.s32 %v47, %v996
  %v998 = vrot.slane %v836, %v997
  %v999 = vlaneseq
  %v1000 = vshrl.u32 %v999, 7
  %v1001 = vsub.s32 %v47, %v1000
  %v1002 = vrot.slane %v837, %v1001
  %v1003 = vlaneseq
  %v1004 = vshrl.u32 %v1003, 7
  %v1005 = vsub.s32 %v47, %v1004
  %v1006 = vrot.slane %v838, %v1005
  %v1007 = vlaneseq
  %v1008 = vshrl.u32 %v1007, 7
  %v1009 = vsub.s32 %v47, %v1008
  %v1010 = vrot.slane %v839, %v1009
  %v1011 = vlaneseq
  %v1012 = vshrl.u32 %v1011, 7
  %v1013 = vsub.s32 %v47, %v1012
  %v1014 = vrot.slane %v840, %v1013
  %v1015 = vlaneseq
  %v1016 = vshrl.u32 %v1015, 7
  %v1017 = vsub.s32 %v47, %v1016
  %v1018 = vrot.slane %v841, %v1017
  %vm1019 = vcmask 1041409
  %v1020 = vsel %vm1019, %v962, %v958
  %vm1021 = vcmask 1042434
  %v1022 = vsel %vm1021, %v966, %v1020
  %vm1023 = vcmask 1043459
  %v1024 = vsel %vm1023, %v970, %v1022
  %vm1025 = vcmask 1044484
  %v1026 = vsel %vm1025, %v974, %v1024
  %vm1027 = vcmask 1045509
  %v1028 = vsel %vm1027, %v978, %v1026
  %vm1029 = vcmask 1046534
  %v1030 = vsel %vm1029, %v982, %v1028
  %vm1031 = vcmask 1047559
  %v1032 = vsel %vm1031, %v986, %v1030
  %v1033 = vsel %vm1019, %v994, %v990
  %v1034 = vsel %vm1021, %v998, %v1033
  %v1035 = vsel %vm1023, %v1002, %v1034
  %v1036 = vsel %vm1025, %v1006, %v1035
  %v1037 = vsel %vm1027, %v1010, %v1036
  %v1038 = vsel %vm1029, %v1014, %v1037
  %v1039 = vsel %vm1031, %v1018, %v1038
  %v1042 = vadd.f32 %v937, %v1032
  %v1043 = vadd.f32 %v938, %v1039
  %v1044 = vsel %vm759, %v1042, -1e+30
  %v1045 = vsel %vm760, %v1043, -1e+30
  %vm1046 = vcmask 64512
  %v1047 = vsel %vm1046, %v1044, -inf
  %1048 = vmax.xlane.f32.xlu0 %v1047
  %v1049 = vpop.xlane.xlu0 %1048
  %v1050 = vsel %vm1046, %v1045, -inf
  %1051 = vmax.xlane.f32.xlu0 %v1050
  %v1052 = vpop.xlane.xlu0 %1051
  %vm1053 = vcmp.lt.f32.partialorder %v1049, -1e+29
  %vm1054 = vcmp.lt.f32.partialorder %v1052, -1e+29
  %v1055 = vsel %vm1053, 0.0, %v1049
  %v1056 = vsel %vm1054, 0.0, %v1052
  %v1057 = vsub.f32 %v1042, %v1055
  %v1058 = vsub.f32 %v1043, %v1056
  %v1059 = vmul.f32 %v1057, 1.442695
  %v1060 = vpow.pop %v1059
  %v1061 = vmul.f32 %v1058, 1.442695
  %v1062 = vpow.pop %v1061
  %v1063 = vsel %vm759, %v1060, 0.0
  %v1064 = vsel %vm760, %v1062, 0.0
  %v1065 = vsel %vm1046, %v1063, 0.0
  %1066 = vadd.xlane.f32.xlu0 %v1065
  %v1067 = vpop.xlane.xlu0 %1066
  %v1068 = vsel %vm1046, %v1064, 0.0
  %1069 = vadd.xlane.f32.xlu0 %v1068
  %v1070 = vpop.xlane.xlu0 %1069
  %v1071 = vadd.f32 %v1067, 1e-10
  %v1072 = vadd.f32 %v1070, 1e-10
  %v1073 = vrcp.pop %v1071
  %v1074 = vmul.f32 %v1063, %v1073
  %v1075 = vrcp.pop %v1072
  %v1076 = vmul.f32 %v1064, %v1075
  %v1077 = vpack.c.bf16 %v1074, %v1074
  %v1078 = vpack.c.bf16 %v1076, %v1076
  %v1079 = vlaneseq
  %v1080 = vshrl.u32 %v1079, 7
  %v1081 = vsub.s32 0, %v1080
  %v1082 = vrot.slane %v1074, %v1081
  %1084 = vbcast.lane.b32.xlu0 %v1082, 256
  %v1085 = vpop.permute.xlu0 %1084
  %v1086 = vlaneseq
  %v1087 = vshrl.u32 %v1086, 7
  %v1088 = vsub.s32 1, %v1087
  %v1089 = vrot.slane %v1074, %v1088
  %1091 = vbcast.lane.b32.xlu0 %v1089, 256
  %v1092 = vpop.permute.xlu0 %1091
  %v1093 = vlaneseq
  %v1094 = vshrl.u32 %v1093, 7
  %v1095 = vsub.s32 2, %v1094
  %v1096 = vrot.slane %v1074, %v1095
  %1098 = vbcast.lane.b32.xlu0 %v1096, 256
  %v1099 = vpop.permute.xlu0 %1098
  %v1100 = vlaneseq
  %v1101 = vshrl.u32 %v1100, 7
  %v1102 = vsub.s32 3, %v1101
  %v1103 = vrot.slane %v1074, %v1102
  %1105 = vbcast.lane.b32.xlu0 %v1103, 256
  %v1106 = vpop.permute.xlu0 %1105
  %v1107 = vlaneseq
  %v1108 = vshrl.u32 %v1107, 7
  %v1109 = vsub.s32 4, %v1108
  %v1110 = vrot.slane %v1074, %v1109
  %1112 = vbcast.lane.b32.xlu0 %v1110, 256
  %v1113 = vpop.permute.xlu0 %1112
  %v1114 = vlaneseq
  %v1115 = vshrl.u32 %v1114, 7
  %v1116 = vsub.s32 5, %v1115
  %v1117 = vrot.slane %v1074, %v1116
  %1119 = vbcast.lane.b32.xlu0 %v1117, 256
  %v1120 = vpop.permute.xlu0 %1119
  %v1121 = vlaneseq
  %v1122 = vshrl.u32 %v1121, 7
  %v1123 = vsub.s32 6, %v1122
  %v1124 = vrot.slane %v1074, %v1123
  %1126 = vbcast.lane.b32.xlu0 %v1124, 256
  %v1127 = vpop.permute.xlu0 %1126
  %v1128 = vlaneseq
  %v1129 = vshrl.u32 %v1128, 7
  %v1130 = vsub.s32 7, %v1129
  %v1131 = vrot.slane %v1074, %v1130
  %1133 = vbcast.lane.b32.xlu0 %v1131, 256
  %v1134 = vpop.permute.xlu0 %1133
  %v1135 = vlaneseq
  %v1136 = vshrl.u32 %v1135, 7
  %v1137 = vsub.s32 0, %v1136
  %v1138 = vrot.slane %v1076, %v1137
  %1140 = vbcast.lane.b32.xlu0 %v1138, 256
  %v1141 = vpop.permute.xlu0 %1140
  %v1142 = vlaneseq
  %v1143 = vshrl.u32 %v1142, 7
  %v1144 = vsub.s32 1, %v1143
  %v1145 = vrot.slane %v1076, %v1144
  %1147 = vbcast.lane.b32.xlu0 %v1145, 256
  %v1148 = vpop.permute.xlu0 %1147
  %v1149 = vlaneseq
  %v1150 = vshrl.u32 %v1149, 7
  %v1151 = vsub.s32 2, %v1150
  %v1152 = vrot.slane %v1076, %v1151
  %1154 = vbcast.lane.b32.xlu0 %v1152, 256
  %v1155 = vpop.permute.xlu0 %1154
  %v1156 = vlaneseq
  %v1157 = vshrl.u32 %v1156, 7
  %v1158 = vsub.s32 3, %v1157
  %v1159 = vrot.slane %v1076, %v1158
  %1161 = vbcast.lane.b32.xlu0 %v1159, 256
  %v1162 = vpop.permute.xlu0 %1161
  %v1163 = vlaneseq
  %v1164 = vshrl.u32 %v1163, 7
  %v1165 = vsub.s32 4, %v1164
  %v1166 = vrot.slane %v1076, %v1165
  %1168 = vbcast.lane.b32.xlu0 %v1166, 256
  %v1169 = vpop.permute.xlu0 %1168
  %v1170 = vlaneseq
  %v1171 = vshrl.u32 %v1170, 7
  %v1172 = vsub.s32 5, %v1171
  %v1173 = vrot.slane %v1076, %v1172
  %1175 = vbcast.lane.b32.xlu0 %v1173, 256
  %v1176 = vpop.permute.xlu0 %1175
  %v1177 = vlaneseq
  %v1178 = vshrl.u32 %v1177, 7
  %v1179 = vsub.s32 6, %v1178
  %v1180 = vrot.slane %v1076, %v1179
  %1182 = vbcast.lane.b32.xlu0 %v1180, 256
  %v1183 = vpop.permute.xlu0 %1182
  %v1184 = vlaneseq
  %v1185 = vshrl.u32 %v1184, 7
  %v1186 = vsub.s32 7, %v1185
  %v1187 = vrot.slane %v1076, %v1186
  %1189 = vbcast.lane.b32.xlu0 %v1187, 256
  %v1190 = vpop.permute.xlu0 %1189
  %v1191 = vmul.f32 %v1085, %v681
  %v1192 = vmul.f32 %v1092, %v686
  %v1193 = vmul.f32 %v1099, %v691
  %v1194 = vmul.f32 %v1106, %v696
  %v1195 = vmul.f32 %v1113, %v701
  %v1196 = vmul.f32 %v1120, %v706
  %v1197 = vmul.f32 %v1127, %v711
  %v1198 = vmul.f32 %v1134, %v716
  %v1199 = vmul.f32 %v1141, %v721
  %v1200 = vmul.f32 %v1148, %v726
  %v1201 = vmul.f32 %v1155, %v731
  %v1202 = vmul.f32 %v1162, %v736
  %v1203 = vmul.f32 %v1169, %v741
  %v1204 = vmul.f32 %v1176, %v746
  %v1205 = vmul.f32 %v1183, %v751
  %v1206 = vmul.f32 %v1190, %v756
  %v1207 = vsel %vm777, %v1191, 0.0
  %v1208 = vrot.slane %v1207, 4
  %v1209 = vadd.f32 %v1207, %v1208
  %v1210 = vrot.slane %v1209, 2
  %v1211 = vadd.f32 %v1209, %v1210
  %v1212 = vrot.slane %v1211, 1
  %v1213 = vadd.f32 %v1211, %v1212
  %v1214 = vsel %vm777, %v1192, 0.0
  %v1215 = vrot.slane %v1214, 4
  %v1216 = vadd.f32 %v1214, %v1215
  %v1217 = vrot.slane %v1216, 2
  %v1218 = vadd.f32 %v1216, %v1217
  %v1219 = vrot.slane %v1218, 1
  %v1220 = vadd.f32 %v1218, %v1219
  %v1221 = vsel %vm777, %v1193, 0.0
  %v1222 = vrot.slane %v1221, 4
  %v1223 = vadd.f32 %v1221, %v1222
  %v1224 = vrot.slane %v1223, 2
  %v1225 = vadd.f32 %v1223, %v1224
  %v1226 = vrot.slane %v1225, 1
  %v1227 = vadd.f32 %v1225, %v1226
  %v1228 = vsel %vm777, %v1194, 0.0
  %v1229 = vrot.slane %v1228, 4
  %v1230 = vadd.f32 %v1228, %v1229
  %v1231 = vrot.slane %v1230, 2
  %v1232 = vadd.f32 %v1230, %v1231
  %v1233 = vrot.slane %v1232, 1
  %v1234 = vadd.f32 %v1232, %v1233
  %v1235 = vsel %vm777, %v1195, 0.0
  %v1236 = vrot.slane %v1235, 4
  %v1237 = vadd.f32 %v1235, %v1236
  %v1238 = vrot.slane %v1237, 2
  %v1239 = vadd.f32 %v1237, %v1238
  %v1240 = vrot.slane %v1239, 1
  %v1241 = vadd.f32 %v1239, %v1240
  %v1242 = vsel %vm777, %v1196, 0.0
  %v1243 = vrot.slane %v1242, 4
  %v1244 = vadd.f32 %v1242, %v1243
  %v1245 = vrot.slane %v1244, 2
  %v1246 = vadd.f32 %v1244, %v1245
  %v1247 = vrot.slane %v1246, 1
  %v1248 = vadd.f32 %v1246, %v1247
  %v1249 = vsel %vm777, %v1197, 0.0
  %v1250 = vrot.slane %v1249, 4
  %v1251 = vadd.f32 %v1249, %v1250
  %v1252 = vrot.slane %v1251, 2
  %v1253 = vadd.f32 %v1251, %v1252
  %v1254 = vrot.slane %v1253, 1
  %v1255 = vadd.f32 %v1253, %v1254
  %v1256 = vsel %vm777, %v1198, 0.0
  %v1257 = vrot.slane %v1256, 4
  %v1258 = vadd.f32 %v1256, %v1257
  %v1259 = vrot.slane %v1258, 2
  %v1260 = vadd.f32 %v1258, %v1259
  %v1261 = vrot.slane %v1260, 1
  %v1262 = vadd.f32 %v1260, %v1261
  %v1263 = vsel %vm777, %v1199, 0.0
  %v1264 = vrot.slane %v1263, 4
  %v1265 = vadd.f32 %v1263, %v1264
  %v1266 = vrot.slane %v1265, 2
  %v1267 = vadd.f32 %v1265, %v1266
  %v1268 = vrot.slane %v1267, 1
  %v1269 = vadd.f32 %v1267, %v1268
  %v1270 = vsel %vm777, %v1200, 0.0
  %v1271 = vrot.slane %v1270, 4
  %v1272 = vadd.f32 %v1270, %v1271
  %v1273 = vrot.slane %v1272, 2
  %v1274 = vadd.f32 %v1272, %v1273
  %v1275 = vrot.slane %v1274, 1
  %v1276 = vadd.f32 %v1274, %v1275
  %v1277 = vsel %vm777, %v1201, 0.0
  %v1278 = vrot.slane %v1277, 4
  %v1279 = vadd.f32 %v1277, %v1278
  %v1280 = vrot.slane %v1279, 2
  %v1281 = vadd.f32 %v1279, %v1280
  %v1282 = vrot.slane %v1281, 1
  %v1283 = vadd.f32 %v1281, %v1282
  %v1284 = vsel %vm777, %v1202, 0.0
  %v1285 = vrot.slane %v1284, 4
  %v1286 = vadd.f32 %v1284, %v1285
  %v1287 = vrot.slane %v1286, 2
  %v1288 = vadd.f32 %v1286, %v1287
  %v1289 = vrot.slane %v1288, 1
  %v1290 = vadd.f32 %v1288, %v1289
  %v1291 = vsel %vm777, %v1203, 0.0
  %v1292 = vrot.slane %v1291, 4
  %v1293 = vadd.f32 %v1291, %v1292
  %v1294 = vrot.slane %v1293, 2
  %v1295 = vadd.f32 %v1293, %v1294
  %v1296 = vrot.slane %v1295, 1
  %v1297 = vadd.f32 %v1295, %v1296
  %v1298 = vsel %vm777, %v1204, 0.0
  %v1299 = vrot.slane %v1298, 4
  %v1300 = vadd.f32 %v1298, %v1299
  %v1301 = vrot.slane %v1300, 2
  %v1302 = vadd.f32 %v1300, %v1301
  %v1303 = vrot.slane %v1302, 1
  %v1304 = vadd.f32 %v1302, %v1303
  %v1305 = vsel %vm777, %v1205, 0.0
  %v1306 = vrot.slane %v1305, 4
  %v1307 = vadd.f32 %v1305, %v1306
  %v1308 = vrot.slane %v1307, 2
  %v1309 = vadd.f32 %v1307, %v1308
  %v1310 = vrot.slane %v1309, 1
  %v1311 = vadd.f32 %v1309, %v1310
  %v1312 = vsel %vm777, %v1206, 0.0
  %v1313 = vrot.slane %v1312, 4
  %v1314 = vadd.f32 %v1312, %v1313
  %v1315 = vrot.slane %v1314, 2
  %v1316 = vadd.f32 %v1314, %v1315
  %v1317 = vrot.slane %v1316, 1
  %v1318 = vadd.f32 %v1316, %v1317
  %v1327 = vsel %vm1019, %v1220, %v1213
  %v1328 = vsel %vm1021, %v1227, %v1327
  %v1329 = vsel %vm1023, %v1234, %v1328
  %v1330 = vsel %vm1025, %v1241, %v1329
  %v1331 = vsel %vm1027, %v1248, %v1330
  %v1332 = vsel %vm1029, %v1255, %v1331
  %v1333 = vsel %vm1031, %v1262, %v1332
  %v1336 = vsel %vm1046, %v1077, 0
  %vm1338 = vcmask 1043456
  %v1339 = vsel %vm1338, %v849, 0
  %1341 = vmatprep.subr.bf16.mxu0 0
  %1342 = vmatpush1.bf16.msra.mxu0 %v1339
  %1343 = vmatprep.subr.bf16.mxu0 0
  %1344 = vmatpush1.bf16.msra.mxu0 0
  %1345 = vmatprep.subr.bf16.mxu0 0
  %1346 = vmatpush1.bf16.msra.mxu0 0
  %1347 = vmatprep.subr.bf16.mxu0 0
  %1348 = vmatpush1.bf16.msra.mxu0 0
  %1349 = vmatprep.subr.bf16.mxu0 0
  %1350 = vmatpush1.bf16.msra.mxu0 0
  %1351 = vmatprep.subr.bf16.mxu0 0
  %1352 = vmatpush1.bf16.msra.mxu0 0
  %1353 = vmatprep.subr.bf16.mxu0 0
  %1354 = vmatpush1.bf16.msra.mxu0 0
  %1355 = vmatprep.subr.bf16.mxu0 0
  %1356 = vmatpush1.bf16.msra.mxu0 0
  %1357 = vmatprep.subr.bf16.mxu0 0
  %1358 = vmatpush1.bf16.msra.mxu0 0
  %1359 = vmatprep.subr.bf16.mxu0 0
  %1360 = vmatpush1.bf16.msra.mxu0 0
  %1361 = vmatprep.subr.bf16.mxu0 0
  %1362 = vmatpush1.bf16.msra.mxu0 0
  %1363 = vmatprep.subr.bf16.mxu0 0
  %1364 = vmatpush1.bf16.msra.mxu0 0
  %1365 = vmatprep.subr.bf16.mxu0 0
  %1366 = vmatpush1.bf16.msra.mxu0 0
  %1367 = vmatprep.subr.bf16.mxu0 0
  %1368 = vmatpush1.bf16.msra.mxu0 0
  %1369 = vmatprep.subr.bf16.mxu0 0
  %1370 = vmatpush1.bf16.msra.mxu0 0
  %1371 = vmatprep.subr.bf16.mxu0 0
  %1372 = vmatpush1.bf16.msra.mxu0 0
  %1373 = vmatprep.mubr.bf16.mxu0 0
  %1374 = vmatmul.mubr.bf16.gmra.mrb[0].mxu0 %v1336
  %v1375 = vpop.f32.mrb[0].mxu0
  %v1376 = vadd.f32 %v1333, %v1375
  %v1377 = vpop.f32.mrb[0].mxu0
  %v1378 = vpop.f32.mrb[0].mxu0
  %v1379 = vpop.f32.mrb[0].mxu0
  %1380 = vdwg.mxu0
  %v1389 = vsel %vm1019, %v1276, %v1269
  %v1390 = vsel %vm1021, %v1283, %v1389
  %v1391 = vsel %vm1023, %v1290, %v1390
  %v1392 = vsel %vm1025, %v1297, %v1391
  %v1393 = vsel %vm1027, %v1304, %v1392
  %v1394 = vsel %vm1029, %v1311, %v1393
  %v1395 = vsel %vm1031, %v1318, %v1394
  %v1398 = vsel %vm1046, %v1078, 0
  %v1400 = vsel %vm1338, %v850, 0
  %1402 = vmatprep.subr.bf16.mxu0 0
  %1403 = vmatpush1.bf16.msra.mxu0 %v1400
  %1404 = vmatprep.subr.bf16.mxu0 0
  %1405 = vmatpush1.bf16.msra.mxu0 0
  %1406 = vmatprep.subr.bf16.mxu0 0
  %1407 = vmatpush1.bf16.msra.mxu0 0
  %1408 = vmatprep.subr.bf16.mxu0 0
  %1409 = vmatpush1.bf16.msra.mxu0 0
  %1410 = vmatprep.subr.bf16.mxu0 0
  %1411 = vmatpush1.bf16.msra.mxu0 0
  %1412 = vmatprep.subr.bf16.mxu0 0
  %1413 = vmatpush1.bf16.msra.mxu0 0
  %1414 = vmatprep.subr.bf16.mxu0 0
  %1415 = vmatpush1.bf16.msra.mxu0 0
  %1416 = vmatprep.subr.bf16.mxu0 0
  %1417 = vmatpush1.bf16.msra.mxu0 0
  %1418 = vmatprep.subr.bf16.mxu0 0
  %1419 = vmatpush1.bf16.msra.mxu0 0
  %1420 = vmatprep.subr.bf16.mxu0 0
  %1421 = vmatpush1.bf16.msra.mxu0 0
  %1422 = vmatprep.subr.bf16.mxu0 0
  %1423 = vmatpush1.bf16.msra.mxu0 0
  %1424 = vmatprep.subr.bf16.mxu0 0
  %1425 = vmatpush1.bf16.msra.mxu0 0
  %1426 = vmatprep.subr.bf16.mxu0 0
  %1427 = vmatpush1.bf16.msra.mxu0 0
  %1428 = vmatprep.subr.bf16.mxu0 0
  %1429 = vmatpush1.bf16.msra.mxu0 0
  %1430 = vmatprep.subr.bf16.mxu0 0
  %1431 = vmatpush1.bf16.msra.mxu0 0
  %1432 = vmatprep.subr.bf16.mxu0 0
  %1433 = vmatpush1.bf16.msra.mxu0 0
  %1434 = vmatprep.mubr.bf16.mxu0 0
  %1435 = vmatmul.mubr.bf16.gmra.mrb[0].mxu0 %v1398
  %v1436 = vpop.f32.mrb[0].mxu0
  %v1437 = vadd.f32 %v1395, %v1436
  %v1438 = vpop.f32.mrb[0].mxu0
  %v1439 = vpop.f32.mrb[0].mxu0
  %v1440 = vpop.f32.mrb[0].mxu0
  %1441 = vdwg.mxu0
  %v1442 = vpack.c.bf16 %v1376, %v1376
  %v1443 = vpack.c.bf16 %v1437, %v1437
  %v1444 = vlaneseq
  %v1445 = vshrl.u32 %v1444, 7
  %v1446 = vsub.s32 0, %v1445
  %v1447 = vrot.slane %v848, %v1446
  %v1450 = vunpack.c.l.b16 %v1442
  %v1451 = vunpack.c.l.b16 %v1443
  %v1452 = vpack.c.b16 %v1451, %v1450
  %v1454 = vsel %vm777, %v1452, 0
  %1456 = vmatprep.subr.bf16.mxu0 0
  %1457 = vmatpush1.bf16.msra.mxu0 %v846
  %1458 = vmatprep.subr.bf16.mxu0 0
  %1459 = vmatpush1.bf16.msra.mxu0 %v847
  %1460 = vmatprep.subr.bf16.mxu0 0
  %1461 = vmatpush1.bf16.msra.mxu0 0
  %1462 = vmatprep.subr.bf16.mxu0 0
  %1463 = vmatpush1.bf16.msra.mxu0 0
  %1464 = vmatprep.subr.bf16.mxu0 0
  %1465 = vmatpush1.bf16.msra.mxu0 0
  %1466 = vmatprep.subr.bf16.mxu0 0
  %1467 = vmatpush1.bf16.msra.mxu0 0
  %1468 = vmatprep.subr.bf16.mxu0 0
  %1469 = vmatpush1.bf16.msra.mxu0 0
  %1470 = vmatprep.subr.bf16.mxu0 0
  %1471 = vmatpush1.bf16.msra.mxu0 0
  %1472 = vmatprep.subr.bf16.mxu0 0
  %1473 = vmatpush1.bf16.msra.mxu0 0
  %1474 = vmatprep.subr.bf16.mxu0 0
  %1475 = vmatpush1.bf16.msra.mxu0 0
  %1476 = vmatprep.subr.bf16.mxu0 0
  %1477 = vmatpush1.bf16.msra.mxu0 0
  %1478 = vmatprep.subr.bf16.mxu0 0
  %1479 = vmatpush1.bf16.msra.mxu0 0
  %1480 = vmatprep.subr.bf16.mxu0 0
  %1481 = vmatpush1.bf16.msra.mxu0 0
  %1482 = vmatprep.subr.bf16.mxu0 0
  %1483 = vmatpush1.bf16.msra.mxu0 0
  %1484 = vmatprep.subr.bf16.mxu0 0
  %1485 = vmatpush1.bf16.msra.mxu0 0
  %1486 = vmatprep.subr.bf16.mxu0 0
  %1487 = vmatpush1.bf16.msra.mxu0 0
  %1488 = vmatprep.mubr.bf16.mxu0 0
  %1489 = vmatmul.mubr.bf16.gmra.mrb[0].mxu0 %v1454
  %v1490 = vpop.f32.mrb[0].mxu0
  %v1491 = vadd.f32 %v1447, %v1490
  %v1492 = vpop.f32.mrb[0].mxu0
  %v1493 = vpop.f32.mrb[0].mxu0
  %v1494 = vadd.f32 %v1447, %v1493
  %v1495 = vpop.f32.mrb[0].mxu0
  %1496 = vdwg.mxu0
  %v1497 = vmax.f32 %v1491, 0.0
  %v1498 = vmax.f32 %v1494, 0.0
  %s1499 = scalar_lea.vmem %s5, 32
  %v1500 = vld [vmem:[%s1499] sm:$0xff]
  %v1501 = vld [vmem:[%s1499 + $0x8] sm:$0xff]
  %v1502 = vld [vmem:[%s1499 + $0x10] sm:$0xff]
  %v1503 = vld [vmem:[%s1499 + $0x18] sm:$0xff]
  %v1504 = vpack.c.bf16 %v1501, %v1500
  %v1505 = vpack.c.bf16 %v1503, %v1502
  %v1506 = vld [vmem:[%s6 + $0x1] sm:$0x1]
  %v1507 = vpack.c.bf16 %v1497, %v1497
  %v1508 = vpack.c.bf16 %v1498, %v1498
  %v1510 = vsel %vm777, %v1507, 0
  %1512 = vmatprep.subr.bf16.mxu0 0
  %1513 = vmatpush1.bf16.xpose.msra.mxu0 %v1510
  %1514 = vmatprep.subr.bf16.mxu0 0
  %1515 = vmatpush1.bf16.xpose.msra.mxu0 0
  %1516 = vmatprep.subr.bf16.mxu0 0
  %1517 = vmatpush1.bf16.xpose.msra.mxu0 0
  %1518 = vmatprep.subr.bf16.mxu0 0
  %1519 = vmatpush1.bf16.xpose.msra.mxu0 0
  %1520 = vmatprep.subr.bf16.mxu0 0
  %1521 = vmatpush1.bf16.xpose.msra.mxu0 0
  %1522 = vmatprep.subr.bf16.mxu0 0
  %1523 = vmatpush1.bf16.xpose.msra.mxu0 0
  %1524 = vmatprep.subr.bf16.mxu0 0
  %1525 = vmatpush1.bf16.xpose.msra.mxu0 0
  %1526 = vmatprep.subr.bf16.mxu0 0
  %1527 = vmatpush1.bf16.xpose.msra.mxu0 0
  %1528 = vmatprep.subr.bf16.mxu0 0
  %1529 = vmatpush1.bf16.xpose.msra.mxu0 0
  %1530 = vmatprep.subr.bf16.mxu0 0
  %1531 = vmatpush1.bf16.xpose.msra.mxu0 0
  %1532 = vmatprep.subr.bf16.mxu0 0
  %1533 = vmatpush1.bf16.xpose.msra.mxu0 0
  %1534 = vmatprep.subr.bf16.mxu0 0
  %1535 = vmatpush1.bf16.xpose.msra.mxu0 0
  %1536 = vmatprep.subr.bf16.mxu0 0
  %1537 = vmatpush1.bf16.xpose.msra.mxu0 0
  %1538 = vmatprep.subr.bf16.mxu0 0
  %1539 = vmatpush1.bf16.xpose.msra.mxu0 0
  %1540 = vmatprep.subr.bf16.mxu0 0
  %1541 = vmatpush1.bf16.xpose.msra.mxu0 0
  %1542 = vmatprep.subr.bf16.mxu0 0
  %1543 = vmatpush1.bf16.xpose.msra.mxu0 0
  %1544 = vmatprep.mubr.bf16.mxu0 0
  %1545 = vmatmul.mubr.bf16.gmra.mrb[0].mxu0 %v1510
  %v1546 = vpop.f32.mrb[0].mxu0
  %v1547 = vadd.f32 0.0, %v1546
  %v1548 = vpop.f32.mrb[0].mxu0
  %v1549 = vpop.f32.mrb[0].mxu0
  %v1550 = vpop.f32.mrb[0].mxu0
  %1551 = vdwg.mxu0
  %v1553 = vsel %vm777, %v1508, 0
  %1555 = vmatprep.subr.bf16.mxu0 0
  %1556 = vmatpush1.bf16.xpose.msra.mxu0 %v1553
  %1557 = vmatprep.subr.bf16.mxu0 0
  %1558 = vmatpush1.bf16.xpose.msra.mxu0 0
  %1559 = vmatprep.subr.bf16.mxu0 0
  %1560 = vmatpush1.bf16.xpose.msra.mxu0 0
  %1561 = vmatprep.subr.bf16.mxu0 0
  %1562 = vmatpush1.bf16.xpose.msra.mxu0 0
  %1563 = vmatprep.subr.bf16.mxu0 0
  %1564 = vmatpush1.bf16.xpose.msra.mxu0 0
  %1565 = vmatprep.subr.bf16.mxu0 0
  %1566 = vmatpush1.bf16.xpose.msra.mxu0 0
  %1567 = vmatprep.subr.bf16.mxu0 0
  %1568 = vmatpush1.bf16.xpose.msra.mxu0 0
  %1569 = vmatprep.subr.bf16.mxu0 0
  %1570 = vmatpush1.bf16.xpose.msra.mxu0 0
  %1571 = vmatprep.subr.bf16.mxu0 0
  %1572 = vmatpush1.bf16.xpose.msra.mxu0 0
  %1573 = vmatprep.subr.bf16.mxu0 0
  %1574 = vmatpush1.bf16.xpose.msra.mxu0 0
  %1575 = vmatprep.subr.bf16.mxu0 0
  %1576 = vmatpush1.bf16.xpose.msra.mxu0 0
  %1577 = vmatprep.subr.bf16.mxu0 0
  %1578 = vmatpush1.bf16.xpose.msra.mxu0 0
  %1579 = vmatprep.subr.bf16.mxu0 0
  %1580 = vmatpush1.bf16.xpose.msra.mxu0 0
  %1581 = vmatprep.subr.bf16.mxu0 0
  %1582 = vmatpush1.bf16.xpose.msra.mxu0 0
  %1583 = vmatprep.subr.bf16.mxu0 0
  %1584 = vmatpush1.bf16.xpose.msra.mxu0 0
  %1585 = vmatprep.subr.bf16.mxu0 0
  %1586 = vmatpush1.bf16.xpose.msra.mxu0 0
  %1587 = vmatprep.mubr.bf16.mxu0 0
  %1588 = vmatmul.mubr.bf16.gmra.mrb[0].mxu0 %v1553
  %v1589 = vpop.f32.mrb[0].mxu0
  %v1590 = vadd.f32 0.0, %v1589
  %v1591 = vpop.f32.mrb[0].mxu0
  %v1592 = vpop.f32.mrb[0].mxu0
  %v1593 = vpop.f32.mrb[0].mxu0
  %1594 = vdwg.mxu0
  %v1595 = vmul.f32 %v1547, 0.17677669
  %v1596 = vmul.f32 %v1590, 0.17677669
  %v1597 = vadd.f32 %v1595, %v1032
  %v1598 = vadd.f32 %v1596, %v1039
  %v1599 = vsel %vm759, %v1597, -1e+30
  %v1600 = vsel %vm760, %v1598, -1e+30
  %v1601 = vsel %vm1046, %v1599, -inf
  %1602 = vmax.xlane.f32.xlu0 %v1601
  %v1603 = vpop.xlane.xlu0 %1602
  %v1604 = vsel %vm1046, %v1600, -inf
  %1605 = vmax.xlane.f32.xlu0 %v1604
  %v1606 = vpop.xlane.xlu0 %1605
  %vm1607 = vcmp.lt.f32.partialorder %v1603, -1e+29
  %vm1608 = vcmp.lt.f32.partialorder %v1606, -1e+29
  %v1609 = vsel %vm1607, 0.0, %v1603
  %v1610 = vsel %vm1608, 0.0, %v1606
  %v1611 = vsub.f32 %v1597, %v1609
  %v1612 = vsub.f32 %v1598, %v1610
  %v1613 = vmul.f32 %v1611, 1.442695
  %v1614 = vpow.pop %v1613
  %v1615 = vmul.f32 %v1612, 1.442695
  %v1616 = vpow.pop %v1615
  %v1617 = vsel %vm759, %v1614, 0.0
  %v1618 = vsel %vm760, %v1616, 0.0
  %v1619 = vsel %vm1046, %v1617, 0.0
  %1620 = vadd.xlane.f32.xlu0 %v1619
  %v1621 = vpop.xlane.xlu0 %1620
  %v1622 = vsel %vm1046, %v1618, 0.0
  %1623 = vadd.xlane.f32.xlu0 %v1622
  %v1624 = vpop.xlane.xlu0 %1623
  %v1625 = vadd.f32 %v1621, 1e-10
  %v1626 = vadd.f32 %v1624, 1e-10
  %v1627 = vrcp.pop %v1625
  %v1628 = vmul.f32 %v1617, %v1627
  %v1629 = vrcp.pop %v1626
  %v1630 = vmul.f32 %v1618, %v1629
  %v1631 = vpack.c.bf16 %v1628, %v1628
  %v1632 = vpack.c.bf16 %v1630, %v1630
  %v1633 = vlaneseq
  %v1634 = vshrl.u32 %v1633, 7
  %v1635 = vsub.s32 0, %v1634
  %v1636 = vrot.slane %v1628, %v1635
  %1638 = vbcast.lane.b32.xlu0 %v1636, 256
  %v1639 = vpop.permute.xlu0 %1638
  %v1640 = vlaneseq
  %v1641 = vshrl.u32 %v1640, 7
  %v1642 = vsub.s32 1, %v1641
  %v1643 = vrot.slane %v1628, %v1642
  %1645 = vbcast.lane.b32.xlu0 %v1643, 256
  %v1646 = vpop.permute.xlu0 %1645
  %v1647 = vlaneseq
  %v1648 = vshrl.u32 %v1647, 7
  %v1649 = vsub.s32 2, %v1648
  %v1650 = vrot.slane %v1628, %v1649
  %1652 = vbcast.lane.b32.xlu0 %v1650, 256
  %v1653 = vpop.permute.xlu0 %1652
  %v1654 = vlaneseq
  %v1655 = vshrl.u32 %v1654, 7
  %v1656 = vsub.s32 3, %v1655
  %v1657 = vrot.slane %v1628, %v1656
  %1659 = vbcast.lane.b32.xlu0 %v1657, 256
  %v1660 = vpop.permute.xlu0 %1659
  %v1661 = vlaneseq
  %v1662 = vshrl.u32 %v1661, 7
  %v1663 = vsub.s32 4, %v1662
  %v1664 = vrot.slane %v1628, %v1663
  %1666 = vbcast.lane.b32.xlu0 %v1664, 256
  %v1667 = vpop.permute.xlu0 %1666
  %v1668 = vlaneseq
  %v1669 = vshrl.u32 %v1668, 7
  %v1670 = vsub.s32 5, %v1669
  %v1671 = vrot.slane %v1628, %v1670
  %1673 = vbcast.lane.b32.xlu0 %v1671, 256
  %v1674 = vpop.permute.xlu0 %1673
  %v1675 = vlaneseq
  %v1676 = vshrl.u32 %v1675, 7
  %v1677 = vsub.s32 6, %v1676
  %v1678 = vrot.slane %v1628, %v1677
  %1680 = vbcast.lane.b32.xlu0 %v1678, 256
  %v1681 = vpop.permute.xlu0 %1680
  %v1682 = vlaneseq
  %v1683 = vshrl.u32 %v1682, 7
  %v1684 = vsub.s32 7, %v1683
  %v1685 = vrot.slane %v1628, %v1684
  %1687 = vbcast.lane.b32.xlu0 %v1685, 256
  %v1688 = vpop.permute.xlu0 %1687
  %v1689 = vlaneseq
  %v1690 = vshrl.u32 %v1689, 7
  %v1691 = vsub.s32 0, %v1690
  %v1692 = vrot.slane %v1630, %v1691
  %1694 = vbcast.lane.b32.xlu0 %v1692, 256
  %v1695 = vpop.permute.xlu0 %1694
  %v1696 = vlaneseq
  %v1697 = vshrl.u32 %v1696, 7
  %v1698 = vsub.s32 1, %v1697
  %v1699 = vrot.slane %v1630, %v1698
  %1701 = vbcast.lane.b32.xlu0 %v1699, 256
  %v1702 = vpop.permute.xlu0 %1701
  %v1703 = vlaneseq
  %v1704 = vshrl.u32 %v1703, 7
  %v1705 = vsub.s32 2, %v1704
  %v1706 = vrot.slane %v1630, %v1705
  %1708 = vbcast.lane.b32.xlu0 %v1706, 256
  %v1709 = vpop.permute.xlu0 %1708
  %v1710 = vlaneseq
  %v1711 = vshrl.u32 %v1710, 7
  %v1712 = vsub.s32 3, %v1711
  %v1713 = vrot.slane %v1630, %v1712
  %1715 = vbcast.lane.b32.xlu0 %v1713, 256
  %v1716 = vpop.permute.xlu0 %1715
  %v1717 = vlaneseq
  %v1718 = vshrl.u32 %v1717, 7
  %v1719 = vsub.s32 4, %v1718
  %v1720 = vrot.slane %v1630, %v1719
  %1722 = vbcast.lane.b32.xlu0 %v1720, 256
  %v1723 = vpop.permute.xlu0 %1722
  %v1724 = vlaneseq
  %v1725 = vshrl.u32 %v1724, 7
  %v1726 = vsub.s32 5, %v1725
  %v1727 = vrot.slane %v1630, %v1726
  %1729 = vbcast.lane.b32.xlu0 %v1727, 256
  %v1730 = vpop.permute.xlu0 %1729
  %v1731 = vlaneseq
  %v1732 = vshrl.u32 %v1731, 7
  %v1733 = vsub.s32 6, %v1732
  %v1734 = vrot.slane %v1630, %v1733
  %1736 = vbcast.lane.b32.xlu0 %v1734, 256
  %v1737 = vpop.permute.xlu0 %1736
  %v1738 = vlaneseq
  %v1739 = vshrl.u32 %v1738, 7
  %v1740 = vsub.s32 7, %v1739
  %v1741 = vrot.slane %v1630, %v1740
  %1743 = vbcast.lane.b32.xlu0 %v1741, 256
  %v1744 = vpop.permute.xlu0 %1743
  %v1745 = vmul.f32 %v1639, %v681
  %v1746 = vmul.f32 %v1646, %v686
  %v1747 = vmul.f32 %v1653, %v691
  %v1748 = vmul.f32 %v1660, %v696
  %v1749 = vmul.f32 %v1667, %v701
  %v1750 = vmul.f32 %v1674, %v706
  %v1751 = vmul.f32 %v1681, %v711
  %v1752 = vmul.f32 %v1688, %v716
  %v1753 = vmul.f32 %v1695, %v721
  %v1754 = vmul.f32 %v1702, %v726
  %v1755 = vmul.f32 %v1709, %v731
  %v1756 = vmul.f32 %v1716, %v736
  %v1757 = vmul.f32 %v1723, %v741
  %v1758 = vmul.f32 %v1730, %v746
  %v1759 = vmul.f32 %v1737, %v751
  %v1760 = vmul.f32 %v1744, %v756
  %v1761 = vsel %vm777, %v1745, 0.0
  %v1762 = vrot.slane %v1761, 4
  %v1763 = vadd.f32 %v1761, %v1762
  %v1764 = vrot.slane %v1763, 2
  %v1765 = vadd.f32 %v1763, %v1764
  %v1766 = vrot.slane %v1765, 1
  %v1767 = vadd.f32 %v1765, %v1766
  %v1768 = vsel %vm777, %v1746, 0.0
  %v1769 = vrot.slane %v1768, 4
  %v1770 = vadd.f32 %v1768, %v1769
  %v1771 = vrot.slane %v1770, 2
  %v1772 = vadd.f32 %v1770, %v1771
  %v1773 = vrot.slane %v1772, 1
  %v1774 = vadd.f32 %v1772, %v1773
  %v1775 = vsel %vm777, %v1747, 0.0
  %v1776 = vrot.slane %v1775, 4
  %v1777 = vadd.f32 %v1775, %v1776
  %v1778 = vrot.slane %v1777, 2
  %v1779 = vadd.f32 %v1777, %v1778
  %v1780 = vrot.slane %v1779, 1
  %v1781 = vadd.f32 %v1779, %v1780
  %v1782 = vsel %vm777, %v1748, 0.0
  %v1783 = vrot.slane %v1782, 4
  %v1784 = vadd.f32 %v1782, %v1783
  %v1785 = vrot.slane %v1784, 2
  %v1786 = vadd.f32 %v1784, %v1785
  %v1787 = vrot.slane %v1786, 1
  %v1788 = vadd.f32 %v1786, %v1787
  %v1789 = vsel %vm777, %v1749, 0.0
  %v1790 = vrot.slane %v1789, 4
  %v1791 = vadd.f32 %v1789, %v1790
  %v1792 = vrot.slane %v1791, 2
  %v1793 = vadd.f32 %v1791, %v1792
  %v1794 = vrot.slane %v1793, 1
  %v1795 = vadd.f32 %v1793, %v1794
  %v1796 = vsel %vm777, %v1750, 0.0
  %v1797 = vrot.slane %v1796, 4
  %v1798 = vadd.f32 %v1796, %v1797
  %v1799 = vrot.slane %v1798, 2
  %v1800 = vadd.f32 %v1798, %v1799
  %v1801 = vrot.slane %v1800, 1
  %v1802 = vadd.f32 %v1800, %v1801
  %v1803 = vsel %vm777, %v1751, 0.0
  %v1804 = vrot.slane %v1803, 4
  %v1805 = vadd.f32 %v1803, %v1804
  %v1806 = vrot.slane %v1805, 2
  %v1807 = vadd.f32 %v1805, %v1806
  %v1808 = vrot.slane %v1807, 1
  %v1809 = vadd.f32 %v1807, %v1808
  %v1810 = vsel %vm777, %v1752, 0.0
  %v1811 = vrot.slane %v1810, 4
  %v1812 = vadd.f32 %v1810, %v1811
  %v1813 = vrot.slane %v1812, 2
  %v1814 = vadd.f32 %v1812, %v1813
  %v1815 = vrot.slane %v1814, 1
  %v1816 = vadd.f32 %v1814, %v1815
  %v1817 = vsel %vm777, %v1753, 0.0
  %v1818 = vrot.slane %v1817, 4
  %v1819 = vadd.f32 %v1817, %v1818
  %v1820 = vrot.slane %v1819, 2
  %v1821 = vadd.f32 %v1819, %v1820
  %v1822 = vrot.slane %v1821, 1
  %v1823 = vadd.f32 %v1821, %v1822
  %v1824 = vsel %vm777, %v1754, 0.0
  %v1825 = vrot.slane %v1824, 4
  %v1826 = vadd.f32 %v1824, %v1825
  %v1827 = vrot.slane %v1826, 2
  %v1828 = vadd.f32 %v1826, %v1827
  %v1829 = vrot.slane %v1828, 1
  %v1830 = vadd.f32 %v1828, %v1829
  %v1831 = vsel %vm777, %v1755, 0.0
  %v1832 = vrot.slane %v1831, 4
  %v1833 = vadd.f32 %v1831, %v1832
  %v1834 = vrot.slane %v1833, 2
  %v1835 = vadd.f32 %v1833, %v1834
  %v1836 = vrot.slane %v1835, 1
  %v1837 = vadd.f32 %v1835, %v1836
  %v1838 = vsel %vm777, %v1756, 0.0
  %v1839 = vrot.slane %v1838, 4
  %v1840 = vadd.f32 %v1838, %v1839
  %v1841 = vrot.slane %v1840, 2
  %v1842 = vadd.f32 %v1840, %v1841
  %v1843 = vrot.slane %v1842, 1
  %v1844 = vadd.f32 %v1842, %v1843
  %v1845 = vsel %vm777, %v1757, 0.0
  %v1846 = vrot.slane %v1845, 4
  %v1847 = vadd.f32 %v1845, %v1846
  %v1848 = vrot.slane %v1847, 2
  %v1849 = vadd.f32 %v1847, %v1848
  %v1850 = vrot.slane %v1849, 1
  %v1851 = vadd.f32 %v1849, %v1850
  %v1852 = vsel %vm777, %v1758, 0.0
  %v1853 = vrot.slane %v1852, 4
  %v1854 = vadd.f32 %v1852, %v1853
  %v1855 = vrot.slane %v1854, 2
  %v1856 = vadd.f32 %v1854, %v1855
  %v1857 = vrot.slane %v1856, 1
  %v1858 = vadd.f32 %v1856, %v1857
  %v1859 = vsel %vm777, %v1759, 0.0
  %v1860 = vrot.slane %v1859, 4
  %v1861 = vadd.f32 %v1859, %v1860
  %v1862 = vrot.slane %v1861, 2
  %v1863 = vadd.f32 %v1861, %v1862
  %v1864 = vrot.slane %v1863, 1
  %v1865 = vadd.f32 %v1863, %v1864
  %v1866 = vsel %vm777, %v1760, 0.0
  %v1867 = vrot.slane %v1866, 4
  %v1868 = vadd.f32 %v1866, %v1867
  %v1869 = vrot.slane %v1868, 2
  %v1870 = vadd.f32 %v1868, %v1869
  %v1871 = vrot.slane %v1870, 1
  %v1872 = vadd.f32 %v1870, %v1871
  %v1881 = vsel %vm1019, %v1774, %v1767
  %v1882 = vsel %vm1021, %v1781, %v1881
  %v1883 = vsel %vm1023, %v1788, %v1882
  %v1884 = vsel %vm1025, %v1795, %v1883
  %v1885 = vsel %vm1027, %v1802, %v1884
  %v1886 = vsel %vm1029, %v1809, %v1885
  %v1887 = vsel %vm1031, %v1816, %v1886
  %v1890 = vsel %vm1046, %v1631, 0
  %v1892 = vsel %vm1338, %v1507, 0
  %1894 = vmatprep.subr.bf16.mxu0 0
  %1895 = vmatpush1.bf16.msra.mxu0 %v1892
  %1896 = vmatprep.subr.bf16.mxu0 0
  %1897 = vmatpush1.bf16.msra.mxu0 0
  %1898 = vmatprep.subr.bf16.mxu0 0
  %1899 = vmatpush1.bf16.msra.mxu0 0
  %1900 = vmatprep.subr.bf16.mxu0 0
  %1901 = vmatpush1.bf16.msra.mxu0 0
  %1902 = vmatprep.subr.bf16.mxu0 0
  %1903 = vmatpush1.bf16.msra.mxu0 0
  %1904 = vmatprep.subr.bf16.mxu0 0
  %1905 = vmatpush1.bf16.msra.mxu0 0
  %1906 = vmatprep.subr.bf16.mxu0 0
  %1907 = vmatpush1.bf16.msra.mxu0 0
  %1908 = vmatprep.subr.bf16.mxu0 0
  %1909 = vmatpush1.bf16.msra.mxu0 0
  %1910 = vmatprep.subr.bf16.mxu0 0
  %1911 = vmatpush1.bf16.msra.mxu0 0
  %1912 = vmatprep.subr.bf16.mxu0 0
  %1913 = vmatpush1.bf16.msra.mxu0 0
  %1914 = vmatprep.subr.bf16.mxu0 0
  %1915 = vmatpush1.bf16.msra.mxu0 0
  %1916 = vmatprep.subr.bf16.mxu0 0
  %1917 = vmatpush1.bf16.msra.mxu0 0
  %1918 = vmatprep.subr.bf16.mxu0 0
  %1919 = vmatpush1.bf16.msra.mxu0 0
  %1920 = vmatprep.subr.bf16.mxu0 0
  %1921 = vmatpush1.bf16.msra.mxu0 0
  %1922 = vmatprep.subr.bf16.mxu0 0
  %1923 = vmatpush1.bf16.msra.mxu0 0
  %1924 = vmatprep.subr.bf16.mxu0 0
  %1925 = vmatpush1.bf16.msra.mxu0 0
  %1926 = vmatprep.mubr.bf16.mxu0 0
  %1927 = vmatmul.mubr.bf16.gmra.mrb[0].mxu0 %v1890
  %v1928 = vpop.f32.mrb[0].mxu0
  %v1929 = vadd.f32 %v1887, %v1928
  %v1930 = vpop.f32.mrb[0].mxu0
  %v1931 = vpop.f32.mrb[0].mxu0
  %v1932 = vpop.f32.mrb[0].mxu0
  %1933 = vdwg.mxu0
  %v1942 = vsel %vm1019, %v1830, %v1823
  %v1943 = vsel %vm1021, %v1837, %v1942
  %v1944 = vsel %vm1023, %v1844, %v1943
  %v1945 = vsel %vm1025, %v1851, %v1944
  %v1946 = vsel %vm1027, %v1858, %v1945
  %v1947 = vsel %vm1029, %v1865, %v1946
  %v1948 = vsel %vm1031, %v1872, %v1947
  %v1951 = vsel %vm1046, %v1632, 0
  %v1953 = vsel %vm1338, %v1508, 0
  %1955 = vmatprep.subr.bf16.mxu0 0
  %1956 = vmatpush1.bf16.msra.mxu0 %v1953
  %1957 = vmatprep.subr.bf16.mxu0 0
  %1958 = vmatpush1.bf16.msra.mxu0 0
  %1959 = vmatprep.subr.bf16.mxu0 0
  %1960 = vmatpush1.bf16.msra.mxu0 0
  %1961 = vmatprep.subr.bf16.mxu0 0
  %1962 = vmatpush1.bf16.msra.mxu0 0
  %1963 = vmatprep.subr.bf16.mxu0 0
  %1964 = vmatpush1.bf16.msra.mxu0 0
  %1965 = vmatprep.subr.bf16.mxu0 0
  %1966 = vmatpush1.bf16.msra.mxu0 0
  %1967 = vmatprep.subr.bf16.mxu0 0
  %1968 = vmatpush1.bf16.msra.mxu0 0
  %1969 = vmatprep.subr.bf16.mxu0 0
  %1970 = vmatpush1.bf16.msra.mxu0 0
  %1971 = vmatprep.subr.bf16.mxu0 0
  %1972 = vmatpush1.bf16.msra.mxu0 0
  %1973 = vmatprep.subr.bf16.mxu0 0
  %1974 = vmatpush1.bf16.msra.mxu0 0
  %1975 = vmatprep.subr.bf16.mxu0 0
  %1976 = vmatpush1.bf16.msra.mxu0 0
  %1977 = vmatprep.subr.bf16.mxu0 0
  %1978 = vmatpush1.bf16.msra.mxu0 0
  %1979 = vmatprep.subr.bf16.mxu0 0
  %1980 = vmatpush1.bf16.msra.mxu0 0
  %1981 = vmatprep.subr.bf16.mxu0 0
  %1982 = vmatpush1.bf16.msra.mxu0 0
  %1983 = vmatprep.subr.bf16.mxu0 0
  %1984 = vmatpush1.bf16.msra.mxu0 0
  %1985 = vmatprep.subr.bf16.mxu0 0
  %1986 = vmatpush1.bf16.msra.mxu0 0
  %1987 = vmatprep.mubr.bf16.mxu0 0
  %1988 = vmatmul.mubr.bf16.gmra.mrb[0].mxu0 %v1951
  %v1989 = vpop.f32.mrb[0].mxu0
  %v1990 = vadd.f32 %v1948, %v1989
  %v1991 = vpop.f32.mrb[0].mxu0
  %v1992 = vpop.f32.mrb[0].mxu0
  %v1993 = vpop.f32.mrb[0].mxu0
  %1994 = vdwg.mxu0
  %v1995 = vpack.c.bf16 %v1929, %v1929
  %v1996 = vpack.c.bf16 %v1990, %v1990
  %v1997 = vlaneseq
  %v1998 = vshrl.u32 %v1997, 7
  %v1999 = vsub.s32 0, %v1998
  %v2000 = vrot.slane %v1506, %v1999
  %v2003 = vunpack.c.l.b16 %v1995
  %v2004 = vunpack.c.l.b16 %v1996
  %v2005 = vpack.c.b16 %v2004, %v2003
  %v2007 = vsel %vm777, %v2005, 0
  %2009 = vmatprep.subr.bf16.mxu0 0
  %2010 = vmatpush1.bf16.msra.mxu0 %v1504
  %2011 = vmatprep.subr.bf16.mxu0 0
  %2012 = vmatpush1.bf16.msra.mxu0 %v1505
  %2013 = vmatprep.subr.bf16.mxu0 0
  %2014 = vmatpush1.bf16.msra.mxu0 0
  %2015 = vmatprep.subr.bf16.mxu0 0
  %2016 = vmatpush1.bf16.msra.mxu0 0
  %2017 = vmatprep.subr.bf16.mxu0 0
  %2018 = vmatpush1.bf16.msra.mxu0 0
  %2019 = vmatprep.subr.bf16.mxu0 0
  %2020 = vmatpush1.bf16.msra.mxu0 0
  %2021 = vmatprep.subr.bf16.mxu0 0
  %2022 = vmatpush1.bf16.msra.mxu0 0
  %2023 = vmatprep.subr.bf16.mxu0 0
  %2024 = vmatpush1.bf16.msra.mxu0 0
  %2025 = vmatprep.subr.bf16.mxu0 0
  %2026 = vmatpush1.bf16.msra.mxu0 0
  %2027 = vmatprep.subr.bf16.mxu0 0
  %2028 = vmatpush1.bf16.msra.mxu0 0
  %2029 = vmatprep.subr.bf16.mxu0 0
  %2030 = vmatpush1.bf16.msra.mxu0 0
  %2031 = vmatprep.subr.bf16.mxu0 0
  %2032 = vmatpush1.bf16.msra.mxu0 0
  %2033 = vmatprep.subr.bf16.mxu0 0
  %2034 = vmatpush1.bf16.msra.mxu0 0
  %2035 = vmatprep.subr.bf16.mxu0 0
  %2036 = vmatpush1.bf16.msra.mxu0 0
  %2037 = vmatprep.subr.bf16.mxu0 0
  %2038 = vmatpush1.bf16.msra.mxu0 0
  %2039 = vmatprep.subr.bf16.mxu0 0
  %2040 = vmatpush1.bf16.msra.mxu0 0
  %2041 = vmatprep.mubr.bf16.mxu0 0
  %2042 = vmatmul.mubr.bf16.gmra.mrb[0].mxu0 %v2007
  %v2043 = vpop.f32.mrb[0].mxu0
  %v2044 = vadd.f32 %v2000, %v2043
  %v2045 = vpop.f32.mrb[0].mxu0
  %v2046 = vpop.f32.mrb[0].mxu0
  %v2047 = vadd.f32 %v2000, %v2046
  %v2048 = vpop.f32.mrb[0].mxu0
  %2049 = vdwg.mxu0
  %v2050 = vmax.f32 %v2044, 0.0
  %v2051 = vmax.f32 %v2047, 0.0
  %v2052 = vld [vmem:[%s1] sm:$0x3]
  %v2053 = vpack.c.bf16 %v2052, %v2052
  %v2054 = vsel %vm777, %v2050, 0.0
  %v2055 = vrot.slane %v2054, 4
  %v2056 = vadd.f32 %v2054, %v2055
  %v2057 = vrot.slane %v2056, 2
  %v2058 = vadd.f32 %v2056, %v2057
  %v2059 = vrot.slane %v2058, 1
  %v2060 = vadd.f32 %v2058, %v2059
  %v2061 = vsel %vm777, %v2051, 0.0
  %v2062 = vrot.slane %v2061, 4
  %v2063 = vadd.f32 %v2061, %v2062
  %v2064 = vrot.slane %v2063, 2
  %v2065 = vadd.f32 %v2063, %v2064
  %v2066 = vrot.slane %v2065, 1
  %v2067 = vadd.f32 %v2065, %v2066
  %v2068 = vmul.f32 %v2060, 0.125
  %v2069 = vmul.f32 %v2067, 0.125
  %v2070 = vpack.c.bf16 %v2068, %v2068
  %v2071 = vpack.c.bf16 %v2069, %v2069
  %v2072 = vld [vmem:[%s7] sm:$0xff]
  %v2073 = vld [vmem:[%s7 + $0x8] sm:$0xff]
  %v2074 = vld [vmem:[%s7 + $0x10] sm:$0xff]
  %v2075 = vld [vmem:[%s7 + $0x18] sm:$0xff]
  %v2076 = vpack.c.bf16 %v2073, %v2072
  %v2077 = vpack.c.bf16 %v2075, %v2074
  %v2078 = vld [vmem:[%s7 + $0x20] sm:$0xff]
  %v2079 = vld [vmem:[%s7 + $0x28] sm:$0xff]
  %v2080 = vld [vmem:[%s7 + $0x30] sm:$0xff]
  %v2081 = vld [vmem:[%s7 + $0x38] sm:$0xff]
  %v2082 = vpack.c.bf16 %v2079, %v2078
  %v2083 = vpack.c.bf16 %v2081, %v2080
  %v2086 = vunpack.c.l.b16 %v2070
  %v2087 = vunpack.c.l.b16 %v2071
  %v2088 = vsel %vm1019, %v2087, %v2086
  %v2089 = vpack.c.b16 %v2088, %v2088
  %v2091 = vsel %vm777, %v2089, 0
  %2093 = vmatprep.subr.bf16.mxu0 0
  %2094 = vmatpush1.bf16.msra.mxu0 %v2082
  %2095 = vmatprep.subr.bf16.mxu0 0
  %2096 = vmatpush1.bf16.msra.mxu0 %v2083
  %2097 = vmatprep.subr.bf16.mxu0 0
  %2098 = vmatpush1.bf16.msra.mxu0 0
  %2099 = vmatprep.subr.bf16.mxu0 0
  %2100 = vmatpush1.bf16.msra.mxu0 0
  %2101 = vmatprep.subr.bf16.mxu0 0
  %2102 = vmatpush1.bf16.msra.mxu0 0
  %2103 = vmatprep.subr.bf16.mxu0 0
  %2104 = vmatpush1.bf16.msra.mxu0 0
  %2105 = vmatprep.subr.bf16.mxu0 0
  %2106 = vmatpush1.bf16.msra.mxu0 0
  %2107 = vmatprep.subr.bf16.mxu0 0
  %2108 = vmatpush1.bf16.msra.mxu0 0
  %2109 = vmatprep.subr.bf16.mxu0 0
  %2110 = vmatpush1.bf16.msra.mxu0 0
  %2111 = vmatprep.subr.bf16.mxu0 0
  %2112 = vmatpush1.bf16.msra.mxu0 0
  %2113 = vmatprep.subr.bf16.mxu0 0
  %2114 = vmatpush1.bf16.msra.mxu0 0
  %2115 = vmatprep.subr.bf16.mxu0 0
  %2116 = vmatpush1.bf16.msra.mxu0 0
  %2117 = vmatprep.subr.bf16.mxu0 0
  %2118 = vmatpush1.bf16.msra.mxu0 0
  %2119 = vmatprep.subr.bf16.mxu0 0
  %2120 = vmatpush1.bf16.msra.mxu0 0
  %2121 = vmatprep.subr.bf16.mxu0 0
  %2122 = vmatpush1.bf16.msra.mxu0 0
  %2123 = vmatprep.subr.bf16.mxu0 0
  %2124 = vmatpush1.bf16.msra.mxu0 0
  %2125 = vmatprep.mubr.bf16.mxu0 0
  %2126 = vmatmul.mubr.bf16.gmra.mrb[0].mxu0 %v2091
  %v2127 = vpop.f32.mrb[0].mxu0
  %v2128 = vadd.f32 0.0, %v2127
  %v2129 = vpop.f32.mrb[0].mxu0
  %v2130 = vpop.f32.mrb[0].mxu0
  %v2131 = vpop.f32.mrb[0].mxu0
  %2132 = vdwg.mxu0
  %v2134 = vsel %vm777, %v2053, 0
  %2136 = vmatprep.subr.bf16.mxu0 0
  %2137 = vmatpush1.bf16.msra.mxu0 %v2076
  %2138 = vmatprep.subr.bf16.mxu0 0
  %2139 = vmatpush1.bf16.msra.mxu0 %v2077
  %2140 = vmatprep.subr.bf16.mxu0 0
  %2141 = vmatpush1.bf16.msra.mxu0 0
  %2142 = vmatprep.subr.bf16.mxu0 0
  %2143 = vmatpush1.bf16.msra.mxu0 0
  %2144 = vmatprep.subr.bf16.mxu0 0
  %2145 = vmatpush1.bf16.msra.mxu0 0
  %2146 = vmatprep.subr.bf16.mxu0 0
  %2147 = vmatpush1.bf16.msra.mxu0 0
  %2148 = vmatprep.subr.bf16.mxu0 0
  %2149 = vmatpush1.bf16.msra.mxu0 0
  %2150 = vmatprep.subr.bf16.mxu0 0
  %2151 = vmatpush1.bf16.msra.mxu0 0
  %2152 = vmatprep.subr.bf16.mxu0 0
  %2153 = vmatpush1.bf16.msra.mxu0 0
  %2154 = vmatprep.subr.bf16.mxu0 0
  %2155 = vmatpush1.bf16.msra.mxu0 0
  %2156 = vmatprep.subr.bf16.mxu0 0
  %2157 = vmatpush1.bf16.msra.mxu0 0
  %2158 = vmatprep.subr.bf16.mxu0 0
  %2159 = vmatpush1.bf16.msra.mxu0 0
  %2160 = vmatprep.subr.bf16.mxu0 0
  %2161 = vmatpush1.bf16.msra.mxu0 0
  %2162 = vmatprep.subr.bf16.mxu0 0
  %2163 = vmatpush1.bf16.msra.mxu0 0
  %2164 = vmatprep.subr.bf16.mxu0 0
  %2165 = vmatpush1.bf16.msra.mxu0 0
  %2166 = vmatprep.subr.bf16.mxu0 0
  %2167 = vmatpush1.bf16.msra.mxu0 0
  %2168 = vmatprep.mubr.bf16.mxu0 0
  %2169 = vmatmul.mubr.bf16.gmra.mrb[0].mxu0 %v2134
  %v2170 = vpop.f32.mrb[0].mxu0
  %v2171 = vadd.f32 %v2128, %v2170
  %v2172 = vpop.f32.mrb[0].mxu0
  %v2173 = vpop.f32.mrb[0].mxu0
  %v2174 = vpop.f32.mrb[0].mxu0
  %2175 = vdwg.mxu0
  %v2176 = vld [vmem:[%s8] sm:$0x1]
  %v2178 = vlaneseq
  %v2179 = vshrl.u32 %v2178, 7
  %v2180 = vsub.s32 0, %v2179
  %v2181 = vrot.slane %v2176, %v2180
  %v2183 = vadd.f32 %v2171, %v2181
  %v2184 = vpack.c.bf16 %v2183, %v2183
  %v2185 = vld [vmem:[%s9] sm:$0xff]
  %v2186 = vld [vmem:[%s9 + $0x8] sm:$0xff]
  %v2187 = vld [vmem:[%s9 + $0x10] sm:$0xff]
  %v2188 = vld [vmem:[%s9 + $0x18] sm:$0xff]
  %v2189 = vpack.c.bf16 %v2186, %v2185
  %v2190 = vpack.c.bf16 %v2188, %v2187
  %v2191 = vld [vmem:[%s10] sm:$0x1]
  %v2193 = vlaneseq
  %v2194 = vshrl.u32 %v2193, 7
  %v2195 = vsub.s32 0, %v2194
  %v2196 = vrot.slane %v2191, %v2195
  %v2199 = vsel %vm777, %v2184, 0
  %2201 = vmatprep.subr.bf16.mxu0 0
  %2202 = vmatpush1.bf16.msra.mxu0 %v2189
  %2203 = vmatprep.subr.bf16.mxu0 0
  %2204 = vmatpush1.bf16.msra.mxu0 %v2190
  %2205 = vmatprep.subr.bf16.mxu0 0
  %2206 = vmatpush1.bf16.msra.mxu0 0
  %2207 = vmatprep.subr.bf16.mxu0 0
  %2208 = vmatpush1.bf16.msra.mxu0 0
  %2209 = vmatprep.subr.bf16.mxu0 0
  %2210 = vmatpush1.bf16.msra.mxu0 0
  %2211 = vmatprep.subr.bf16.mxu0 0
  %2212 = vmatpush1.bf16.msra.mxu0 0
  %2213 = vmatprep.subr.bf16.mxu0 0
  %2214 = vmatpush1.bf16.msra.mxu0 0
  %2215 = vmatprep.subr.bf16.mxu0 0
  %2216 = vmatpush1.bf16.msra.mxu0 0
  %2217 = vmatprep.subr.bf16.mxu0 0
  %2218 = vmatpush1.bf16.msra.mxu0 0
  %2219 = vmatprep.subr.bf16.mxu0 0
  %2220 = vmatpush1.bf16.msra.mxu0 0
  %2221 = vmatprep.subr.bf16.mxu0 0
  %2222 = vmatpush1.bf16.msra.mxu0 0
  %2223 = vmatprep.subr.bf16.mxu0 0
  %2224 = vmatpush1.bf16.msra.mxu0 0
  %2225 = vmatprep.subr.bf16.mxu0 0
  %2226 = vmatpush1.bf16.msra.mxu0 0
  %2227 = vmatprep.subr.bf16.mxu0 0
  %2228 = vmatpush1.bf16.msra.mxu0 0
  %2229 = vmatprep.subr.bf16.mxu0 0
  %2230 = vmatpush1.bf16.msra.mxu0 0
  %2231 = vmatprep.subr.bf16.mxu0 0
  %2232 = vmatpush1.bf16.msra.mxu0 0
  %2233 = vmatprep.mubr.bf16.mxu0 0
  %2234 = vmatmul.mubr.bf16.gmra.mrb[0].mxu0 %v2199
  %v2235 = vpop.f32.mrb[0].mxu0
  %v2236 = vadd.f32 %v2196, %v2235
  %v2237 = vpop.f32.mrb[0].mxu0
  %v2238 = vpop.f32.mrb[0].mxu0
  %v2239 = vpop.f32.mrb[0].mxu0
  %2240 = vdwg.mxu0
  %2241 = vst [vmem:[%s11] sm:$0x3] 0.0
  %vm2242 = vcmask 254976
  %2243 = vst.msk [vmem:[%s11] sm:$0x3] %vm2242, %v2183
  %2245 = vrot.lane.b32.xlu0 %v2236, 32
  %v2246 = vpop.permute.xlu0 %2245
  %vm2248 = vcmask 288000
  %2249 = vst.msk [vmem:[%s11] sm:$0x3] %vm2248, %v2246
  // Predicated region
  $region46: #{_forward_impl.1} parent=0 // pred_check
    _
  $region47: #{_forward_impl.1} parent=0 // pred_check_branch
    %2251 = sbr.rel (0) target = $region49
  $region48: #{_forward_impl.1} parent=0 // pred_region
    _
  $region49: #{_forward_impl.1} parent=0 // pred_fallthru
    _
  // Predicated region
  $region50: #{_forward_impl.1} parent=0 // pred_check
    _
  $region51: #{_forward_impl.1} parent=0 // pred_check_branch
    %2253 = sbr.rel (0) target = $region53
  $region52: #{_forward_impl.1} parent=0 // pred_region
    _
  $region53: #{_forward_impl.1} parent=0 // pred_fallthru
    _

</llo_original>
